<compile_context>
chip_gen: v7x
topology: tpu7x:2x2x1
jax: 0.10.0
libtpu: 0.0.40
codegen_flags: <defaults>
</compile_context>

<pallas_src>
import jax
import jax.numpy as jnp
import numpy as np
from jax import lax
from jax.experimental import pallas as pl
from jax.experimental.pallas import tpu as pltpu


# ----------------------------------------------------------------------------
# Pallas kernel: whole forward pass (fused bidir GRU + Linear + log_softmax)
# ----------------------------------------------------------------------------
def myrnn_kernel(x_ref, w_ref, b_ref, out_ref, feat_ref):
    S, D2 = x_ref.shape                    # D2 = 2*D  ([x | x reversed] columns)
    H6 = w_ref.shape[1]
    H = H6 // 6
    H2, H4 = 2 * H, 4 * H
    LW = out_ref.shape[1]                  # padded logit width (one vreg)

    # Weight slab rows: [0:2D) select-free input proj, [2D:2D+2H) block-diag
    # recurrent, [2D+2H:2D+4H) padded linear weight (real cols [0:2)).
    w_in = w_ref[0:D2, :]                              # (2D, 6H) bf16
    whh_blk = w_ref[D2:D2 + H2, :]                     # (2H, 6H) bf16
    wlin_pad = w_ref[D2 + H2:D2 + H4, 0:LW]            # (2H, LW) bf16

    # Bias slab rows: 0 = gi bias (bih + folded bhh_{z,r}); 1 = bhh_n (in n
    # columns, zeros elsewhere); 2 = linear bias (cols [0:2), zeros elsewhere).
    b_in = b_ref[0:1, :]                               # (1, 6H) f32
    b_hn = b_ref[1:2, :]                               # (1, 6H) f32
    b_lin = b_ref[2:3, 0:LW]                           # (1, LW) f32

    # Input projections for both directions, all timesteps, one MXU dot.
    # Row i already carries fwd gates of x[i] and bwd gates of x[S-1-i].
    x = x_ref[...].astype(jnp.bfloat16)
    gi = jnp.dot(x, w_in, preferred_element_type=jnp.float32) + b_in   # (S, 6H)

    h = jnp.zeros((1, H2), jnp.float32)                # [h_fwd | h_bwd]

    for i in range(S):                                 # fully unrolled (S static)
        gi_row = gi[i:i + 1, :]                        # (1, 6H)
        # One block-diag MXU dot covers both directions' recurrent gates.
        gh = jnp.dot(h.astype(jnp.bfloat16), whh_blk,
                     preferred_element_type=jnp.float32) + b_hn        # (1, 6H)
        # sigmoid(x) == 0.5*(tanh(x/2)+1): single EUP transcendental.
        zr = 0.5 * (jnp.tanh(0.5 * (gi_row[:, 0:H4] + gh[:, 0:H4])) + 1.0)
        z = zr[:, 0:H2]                                # lanes 0:2H, aligned with h
        r = zr[:, H2:H4]                               # lanes 2H:4H
        n = jnp.tanh(gi_row[:, H4:H6] + r * gh[:, H4:H6])
        h = (1.0 - z) * n + z * h
        # Snapshot stores (off the h dependency chain); backward half lands at
        # its real time index S-1-i, so no reversal / concat at the tail.
        feat_ref[i:i + 1, 0:H] = h[:, 0:H]
        feat_ref[S - 1 - i:S - i, H:H2] = h[:, H:H2]

    # Linear(2H -> 2) via 128-lane padded weight, then log_softmax over the
    # 2 real classes; padded lanes carry (0 - m - lse), sliced off in wrapper.
    feat = feat_ref[...].astype(jnp.bfloat16)                          # (S, 2H)
    logits = jnp.dot(feat, wlin_pad,
                     preferred_element_type=jnp.float32) + b_lin       # (S, LW)
    lg = logits[:, 0:2]
    m = jnp.max(lg, axis=1, keepdims=True)
    lse = jnp.log(jnp.sum(jnp.exp(lg - m), axis=1, keepdims=True))
    out_ref[...] = logits - (m + lse)                  # lane-dense full store


# ----------------------------------------------------------------------------
# Wrapper: pack weights/biases into two slabs and invoke the kernel.
# ----------------------------------------------------------------------------
def myrnn_forward(x, params):
    S, D = x.shape
    H = params["whh_f"].shape[1]
    H2, H3, H4, H6 = 2 * H, 3 * H, 4 * H, 6 * H
    f32, bf16 = jnp.float32, jnp.bfloat16

    wihT_f = params["wih_f"].T.astype(f32)          # (D, 3H), cols [r | z | n]
    wihT_b = params["wih_b"].T.astype(f32)
    whhT_f = params["whh_f"].T.astype(f32)          # (H, 3H)
    whhT_b = params["whh_b"].T.astype(f32)

    def pack_cols(a, b):
        # (.., 3H)+(.., 3H) -> (.., 6H): reorder to [z | r | n], interleave dirs:
        # [z_a z_b | r_a r_b | n_a n_b]
        return jnp.concatenate(
            [a[:, H:H2], b[:, H:H2],
             a[:, 0:H], b[:, 0:H],
             a[:, H2:H3], b[:, H2:H3]], axis=1)

    def pack_vec(a, b):
        return jnp.concatenate(
            [a[H:H2], b[H:H2], a[0:H], b[0:H], a[H2:H3], b[H2:H3]])

    zD3 = jnp.zeros((D, H3), f32)
    zH3 = jnp.zeros((H, H3), f32)

    # Select-free input projection: rows [0:D) consume x[t] (fwd columns only),
    # rows [D:2D) consume x[S-1-t] (bwd columns only).
    w_in2 = jnp.concatenate(
        [pack_cols(wihT_f, zD3), pack_cols(zD3, wihT_b)], axis=0)       # (2D, 6H)

    # Block-diagonal recurrent weight: rows [0:H) act on h_fwd, [H:2H) on h_bwd.
    whh_blk = jnp.concatenate(
        [pack_cols(whhT_f, zH3), pack_cols(zH3, whhT_b)], axis=0)       # (2H, 6H)

    # Linear weight, real outputs in cols [0:2); kernel slices the first 128 lanes.
    wlinT = params["wlin"].T.astype(f32)                                # (2H, 2)
    wlin_pad = jnp.concatenate(
        [wlinT, jnp.zeros((H2, H6 - 2), f32)], axis=1)                  # (2H, 6H)

    w_slab = jnp.concatenate([w_in2, whh_blk, wlin_pad],
                             axis=0).astype(bf16)                       # (2D+4H, 6H)

    # Bias slab: row0 = gi bias (bih with bhh_{z,r} folded in), row1 = bhh_n in
    # n-columns, row2 = linear bias.  Kept in f32 (added after f32 accumulation).
    bih_f, bih_b = params["bih_f"].astype(f32), params["bih_b"].astype(f32)
    bhh_f, bhh_b = params["bhh_f"].astype(f32), params["bhh_b"].astype(f32)
    gi_bias_f = jnp.concatenate([bih_f[0:H2] + bhh_f[0:H2], bih_f[H2:H3]])
    gi_bias_b = jnp.concatenate([bih_b[0:H2] + bhh_b[0:H2], bih_b[H2:H3]])
    b_in = pack_vec(gi_bias_f, gi_bias_b)                               # (6H,)
    b_hn = jnp.concatenate(
        [jnp.zeros((H4,), f32), bhh_f[H2:H3], bhh_b[H2:H3]])
    b_lin = jnp.concatenate(
        [params["blin"].astype(f32), jnp.zeros((H6 - 2,), f32)])
    b_slab = jnp.stack([b_in, b_hn, b_lin], axis=0)                     # (3, 6H)

    # [x | x time-reversed] so the kernel needs no per-step direction select.
    xf = x.astype(f32)
    x_both = jnp.concatenate([xf, xf[::-1, :]], axis=1)                 # (S, 2D)

    LW = min(128, H6)                       # lane-dense (one-vreg) logit width
    vmem = pl.BlockSpec(memory_space=pltpu.MemorySpace.VMEM)
    out_pad = pl.pallas_call(
        myrnn_kernel,
        out_shape=jax.ShapeDtypeStruct((S, LW), jnp.float32),
        in_specs=[vmem, vmem, vmem],
        out_specs=vmem,
        scratch_shapes=[pltpu.VMEM((S, H2), jnp.float32)],
    )(x_both, w_slab, b_slab)
    return out_pad[:, 0:2]


# ----------------------------------------------------------------------------
# Pure-JAX reference (mirrors torch.nn.GRU / Linear / log_softmax semantics)
# ----------------------------------------------------------------------------
def myrnn_reference(x, params):
    def run_dir(x_seq, wih, whh, bih, bhh):
        H = whh.shape[1]

        def step(h, xt):
            gi = wih @ xt + bih
            gh = whh @ h + bhh
            i_r, i_z, i_n = gi[:H], gi[H:2 * H], gi[2 * H:]
            h_r, h_z, h_n = gh[:H], gh[H:2 * H], gh[2 * H:]
            r = jax.nn.sigmoid(i_r + h_r)
            z = jax.nn.sigmoid(i_z + h_z)
            n = jnp.tanh(i_n + r * h_n)
            h_new = (1.0 - z) * n + z * h
            return h_new, h_new

        _, hs = lax.scan(step, jnp.zeros((H,), jnp.float32), x_seq)
        return hs

    h_f = run_dir(x, params["wih_f"], params["whh_f"],
                  params["bih_f"], params["bhh_f"])
    h_b = run_dir(x[::-1], params["wih_b"], params["whh_b"],
                  params["bih_b"], params["bhh_b"])[::-1]
    feat = jnp.concatenate([h_f, h_b], axis=-1)
    logits = feat @ params["wlin"].T + params["blin"]
    return jax.nn.log_softmax(logits, axis=1)


# ----------------------------------------------------------------------------
# Deterministic parameter init (shapes match nn.GRU(D,H,bidirectional) + Linear)
# ----------------------------------------------------------------------------
def init_params(key, n_dim, n_hidden):
    ks = jax.random.split(key, 10)
    kg = 1.0 / np.sqrt(n_hidden)
    kl = 1.0 / np.sqrt(2 * n_hidden)
    u = lambda k, shape, s: jax.random.uniform(k, shape, jnp.float32, -s, s)
    return {
        "wih_f": u(ks[0], (3 * n_hidden, n_dim), kg),
        "whh_f": u(ks[1], (3 * n_hidden, n_hidden), kg),
        "bih_f": u(ks[2], (3 * n_hidden,), kg),
        "bhh_f": u(ks[3], (3 * n_hidden,), kg),
        "wih_b": u(ks[4], (3 * n_hidden, n_dim), kg),
        "whh_b": u(ks[5], (3 * n_hidden, n_hidden), kg),
        "bih_b": u(ks[6], (3 * n_hidden,), kg),
        "bhh_b": u(ks[7], (3 * n_hidden,), kg),
        "wlin": u(ks[8], (2, 2 * n_hidden), kl),
        "blin": u(ks[9], (2,), kl),
    }


if __name__ == "__main__":
    SEQ, N_DIM, N_HIDDEN = 8, 16, 32

    key = jax.random.PRNGKey(0)
    k_x, k_p = jax.random.split(key)
    x = jax.random.normal(k_x, (SEQ, N_DIM), jnp.float32)
    params = init_params(k_p, N_DIM, N_HIDDEN)

    out = jax.block_until_ready(myrnn_forward(x, params))
    ref = jax.block_until_ready(myrnn_reference(x, params))
    # bf16 MXU operands (f32 accumulation) vs. the f32 reference: widened tol.
    np.testing.assert_allclose(np.asarray(out), np.asarray(ref),
                               atol=2e-2, rtol=2e-2)

    print("KERNEL_OK")
</pallas_src>

<mosaic_0001>
module attributes {stable_mosaic.version = 11 : i64} {
  func.func @myrnn_kernel(%arg0: memref<8x32xf32, #tpu.memory_space<vmem>>, %arg1: memref<160x192xbf16, #tpu.memory_space<vmem>>, %arg2: memref<3x192xf32, #tpu.memory_space<vmem>>, %arg3: memref<8x128xf32, #tpu.memory_space<vmem>>, %arg4: memref<8x64xf32, #tpu.memory_space<vmem>>) attributes {dimension_semantics = [], scalar_prefetch = 0 : i64, scratch_operands = 1 : i64, tpu.core_type = #tpu.core_type<tc>} {
    %c0 = arith.constant 0 : index
    %c0_0 = arith.constant 0 : index
    %0 = vector.load %arg1[%c0, %c0_0] : memref<160x192xbf16, #tpu.memory_space<vmem>>, vector<32x192xbf16>
    %c32 = arith.constant 32 : index
    %c0_1 = arith.constant 0 : index
    %1 = vector.load %arg1[%c32, %c0_1] : memref<160x192xbf16, #tpu.memory_space<vmem>>, vector<64x192xbf16>
    %c96 = arith.constant 96 : index
    %c0_2 = arith.constant 0 : index
    %2 = vector.load %arg1[%c96, %c0_2] : memref<160x192xbf16, #tpu.memory_space<vmem>>, vector<64x128xbf16>
    %c0_3 = arith.constant 0 : index
    %c0_4 = arith.constant 0 : index
    %3 = vector.load %arg2[%c0_3, %c0_4] : memref<3x192xf32, #tpu.memory_space<vmem>>, vector<1x192xf32>
    %c1 = arith.constant 1 : index
    %c0_5 = arith.constant 0 : index
    %4 = vector.load %arg2[%c1, %c0_5] : memref<3x192xf32, #tpu.memory_space<vmem>>, vector<1x192xf32>
    %c2 = arith.constant 2 : index
    %c0_6 = arith.constant 0 : index
    %5 = vector.load %arg2[%c2, %c0_6] : memref<3x192xf32, #tpu.memory_space<vmem>>, vector<1x128xf32>
    %c0_7 = arith.constant 0 : index
    %c0_8 = arith.constant 0 : index
    %6 = vector.load %arg0[%c0_7, %c0_8] : memref<8x32xf32, #tpu.memory_space<vmem>>, vector<8x32xf32>
    %7 = arith.truncf %6 : vector<8x32xf32> to vector<8x32xbf16>
    %cst = arith.constant dense<0.000000e+00> : vector<8x192xf32>
    %8 = tpu.matmul %7, %0, %cst {dimension_numbers = #tpu.dot_dimension_numbers<[1], [0], [0], [1], [0, 0, 1, 1], [], []>} : vector<8x32xbf16>, vector<32x192xbf16>, vector<8x192xf32> -> vector<8x192xf32>
    %9 = vector.broadcast %3 : vector<1x192xf32> to vector<8x192xf32>
    %10 = arith.addf %8, %9 : vector<8x192xf32>
    %cst_9 = arith.constant 0.000000e+00 : f32
    %11 = vector.broadcast %cst_9 : f32 to vector<1x64xf32>
    %12 = vector.extract_strided_slice %10 {offsets = [0, 0], sizes = [1, 192], strides = [1, 1]} : vector<8x192xf32> to vector<1x192xf32>
    %13 = arith.truncf %11 : vector<1x64xf32> to vector<1x64xbf16>
    %cst_10 = arith.constant dense<0.000000e+00> : vector<1x192xf32>
    %14 = tpu.matmul %13, %1, %cst_10 {dimension_numbers = #tpu.dot_dimension_numbers<[1], [0], [0], [1], [0, 0, 1, 1], [], []>} : vector<1x64xbf16>, vector<64x192xbf16>, vector<1x192xf32> -> vector<1x192xf32>
    %15 = arith.addf %14, %4 : vector<1x192xf32>
    %16 = vector.extract_strided_slice %12 {offsets = [0, 0], sizes = [1, 128], strides = [1, 1]} : vector<1x192xf32> to vector<1x128xf32>
    %17 = vector.extract_strided_slice %15 {offsets = [0, 0], sizes = [1, 128], strides = [1, 1]} : vector<1x192xf32> to vector<1x128xf32>
    %18 = arith.addf %16, %17 : vector<1x128xf32>
    %cst_11 = arith.constant 5.000000e-01 : f32
    %19 = vector.broadcast %cst_11 : f32 to vector<1x128xf32>
    %20 = arith.mulf %19, %18 : vector<1x128xf32>
    %21 = math.tanh %20 : vector<1x128xf32>
    %cst_12 = arith.constant 1.000000e+00 : f32
    %22 = vector.broadcast %cst_12 : f32 to vector<1x128xf32>
    %23 = arith.addf %21, %22 : vector<1x128xf32>
    %cst_13 = arith.constant 5.000000e-01 : f32
    %24 = vector.broadcast %cst_13 : f32 to vector<1x128xf32>
    %25 = arith.mulf %24, %23 : vector<1x128xf32>
    %26 = vector.extract_strided_slice %25 {offsets = [0, 0], sizes = [1, 64], strides = [1, 1]} : vector<1x128xf32> to vector<1x64xf32>
    %27 = vector.extract_strided_slice %25 {offsets = [0, 64], sizes = [1, 64], strides = [1, 1]} : vector<1x128xf32> to vector<1x64xf32>
    %28 = vector.extract_strided_slice %12 {offsets = [0, 128], sizes = [1, 64], strides = [1, 1]} : vector<1x192xf32> to vector<1x64xf32>
    %29 = vector.extract_strided_slice %15 {offsets = [0, 128], sizes = [1, 64], strides = [1, 1]} : vector<1x192xf32> to vector<1x64xf32>
    %30 = arith.mulf %27, %29 : vector<1x64xf32>
    %31 = arith.addf %28, %30 : vector<1x64xf32>
    %32 = math.tanh %31 : vector<1x64xf32>
    %cst_14 = arith.constant 1.000000e+00 : f32
    %33 = vector.broadcast %cst_14 : f32 to vector<1x64xf32>
    %34 = arith.subf %33, %26 : vector<1x64xf32>
    %35 = arith.mulf %34, %32 : vector<1x64xf32>
    %36 = arith.mulf %26, %11 : vector<1x64xf32>
    %37 = arith.addf %35, %36 : vector<1x64xf32>
    %38 = vector.extract_strided_slice %37 {offsets = [0, 0], sizes = [1, 32], strides = [1, 1]} : vector<1x64xf32> to vector<1x32xf32>
    %c0_15 = arith.constant 0 : index
    %c0_16 = arith.constant 0 : index
    %39 = vector.load %arg4[%c0_15, %c0_16] : memref<8x64xf32, #tpu.memory_space<vmem>>, vector<1x32xf32>
    tpu.vector_store %arg4[%c0_15, %c0_16], %38 {strides = array<i32>} : memref<8x64xf32, #tpu.memory_space<vmem>>, vector<1x32xf32>,
    %40 = vector.extract_strided_slice %37 {offsets = [0, 32], sizes = [1, 32], strides = [1, 1]} : vector<1x64xf32> to vector<1x32xf32>
    %c7 = arith.constant 7 : index
    %c32_17 = arith.constant 32 : index
    %41 = vector.load %arg4[%c7, %c32_17] : memref<8x64xf32, #tpu.memory_space<vmem>>, vector<1x32xf32>
    tpu.vector_store %arg4[%c7, %c32_17], %40 {strides = array<i32>} : memref<8x64xf32, #tpu.memory_space<vmem>>, vector<1x32xf32>,
    %42 = vector.extract_strided_slice %10 {offsets = [1, 0], sizes = [1, 192], strides = [1, 1]} : vector<8x192xf32> to vector<1x192xf32>
    %43 = arith.truncf %37 : vector<1x64xf32> to vector<1x64xbf16>
    %cst_18 = arith.constant dense<0.000000e+00> : vector<1x192xf32>
    %44 = tpu.matmul %43, %1, %cst_18 {dimension_numbers = #tpu.dot_dimension_numbers<[1], [0], [0], [1], [0, 0, 1, 1], [], []>} : vector<1x64xbf16>, vector<64x192xbf16>, vector<1x192xf32> -> vector<1x192xf32>
    %45 = arith.addf %44, %4 : vector<1x192xf32>
    %46 = vector.extract_strided_slice %42 {offsets = [0, 0], sizes = [1, 128], strides = [1, 1]} : vector<1x192xf32> to vector<1x128xf32>
    %47 = vector.extract_strided_slice %45 {offsets = [0, 0], sizes = [1, 128], strides = [1, 1]} : vector<1x192xf32> to vector<1x128xf32>
    %48 = arith.addf %46, %47 : vector<1x128xf32>
    %cst_19 = arith.constant 5.000000e-01 : f32
    %49 = vector.broadcast %cst_19 : f32 to vector<1x128xf32>
    %50 = arith.mulf %49, %48 : vector<1x128xf32>
    %51 = math.tanh %50 : vector<1x128xf32>
    %cst_20 = arith.constant 1.000000e+00 : f32
    %52 = vector.broadcast %cst_20 : f32 to vector<1x128xf32>
    %53 = arith.addf %51, %52 : vector<1x128xf32>
    %cst_21 = arith.constant 5.000000e-01 : f32
    %54 = vector.broadcast %cst_21 : f32 to vector<1x128xf32>
    %55 = arith.mulf %54, %53 : vector<1x128xf32>
    %56 = vector.extract_strided_slice %55 {offsets = [0, 0], sizes = [1, 64], strides = [1, 1]} : vector<1x128xf32> to vector<1x64xf32>
    %57 = vector.extract_strided_slice %55 {offsets = [0, 64], sizes = [1, 64], strides = [1, 1]} : vector<1x128xf32> to vector<1x64xf32>
    %58 = vector.extract_strided_slice %42 {offsets = [0, 128], sizes = [1, 64], strides = [1, 1]} : vector<1x192xf32> to vector<1x64xf32>
    %59 = vector.extract_strided_slice %45 {offsets = [0, 128], sizes = [1, 64], strides = [1, 1]} : vector<1x192xf32> to vector<1x64xf32>
    %60 = arith.mulf %57, %59 : vector<1x64xf32>
    %61 = arith.addf %58, %60 : vector<1x64xf32>
    %62 = math.tanh %61 : vector<1x64xf32>
    %cst_22 = arith.constant 1.000000e+00 : f32
    %63 = vector.broadcast %cst_22 : f32 to vector<1x64xf32>
    %64 = arith.subf %63, %56 : vector<1x64xf32>
    %65 = arith.mulf %64, %62 : vector<1x64xf32>
    %66 = arith.mulf %56, %37 : vector<1x64xf32>
    %67 = arith.addf %65, %66 : vector<1x64xf32>
    %68 = vector.extract_strided_slice %67 {offsets = [0, 0], sizes = [1, 32], strides = [1, 1]} : vector<1x64xf32> to vector<1x32xf32>
    %c1_23 = arith.constant 1 : index
    %c0_24 = arith.constant 0 : index
    %69 = vector.load %arg4[%c1_23, %c0_24] : memref<8x64xf32, #tpu.memory_space<vmem>>, vector<1x32xf32>
    tpu.vector_store %arg4[%c1_23, %c0_24], %68 {strides = array<i32>} : memref<8x64xf32, #tpu.memory_space<vmem>>, vector<1x32xf32>,
    %70 = vector.extract_strided_slice %67 {offsets = [0, 32], sizes = [1, 32], strides = [1, 1]} : vector<1x64xf32> to vector<1x32xf32>
    %c6 = arith.constant 6 : index
    %c32_25 = arith.constant 32 : index
    %71 = vector.load %arg4[%c6, %c32_25] : memref<8x64xf32, #tpu.memory_space<vmem>>, vector<1x32xf32>
    tpu.vector_store %arg4[%c6, %c32_25], %70 {strides = array<i32>} : memref<8x64xf32, #tpu.memory_space<vmem>>, vector<1x32xf32>,
    %72 = vector.extract_strided_slice %10 {offsets = [2, 0], sizes = [1, 192], strides = [1, 1]} : vector<8x192xf32> to vector<1x192xf32>
    %73 = arith.truncf %67 : vector<1x64xf32> to vector<1x64xbf16>
    %cst_26 = arith.constant dense<0.000000e+00> : vector<1x192xf32>
    %74 = tpu.matmul %73, %1, %cst_26 {dimension_numbers = #tpu.dot_dimension_numbers<[1], [0], [0], [1], [0, 0, 1, 1], [], []>} : vector<1x64xbf16>, vector<64x192xbf16>, vector<1x192xf32> -> vector<1x192xf32>
    %75 = arith.addf %74, %4 : vector<1x192xf32>
    %76 = vector.extract_strided_slice %72 {offsets = [0, 0], sizes = [1, 128], strides = [1, 1]} : vector<1x192xf32> to vector<1x128xf32>
    %77 = vector.extract_strided_slice %75 {offsets = [0, 0], sizes = [1, 128], strides = [1, 1]} : vector<1x192xf32> to vector<1x128xf32>
    %78 = arith.addf %76, %77 : vector<1x128xf32>
    %cst_27 = arith.constant 5.000000e-01 : f32
    %79 = vector.broadcast %cst_27 : f32 to vector<1x128xf32>
    %80 = arith.mulf %79, %78 : vector<1x128xf32>
    %81 = math.tanh %80 : vector<1x128xf32>
    %cst_28 = arith.constant 1.000000e+00 : f32
    %82 = vector.broadcast %cst_28 : f32 to vector<1x128xf32>
    %83 = arith.addf %81, %82 : vector<1x128xf32>
    %cst_29 = arith.constant 5.000000e-01 : f32
    %84 = vector.broadcast %cst_29 : f32 to vector<1x128xf32>
    %85 = arith.mulf %84, %83 : vector<1x128xf32>
    %86 = vector.extract_strided_slice %85 {offsets = [0, 0], sizes = [1, 64], strides = [1, 1]} : vector<1x128xf32> to vector<1x64xf32>
    %87 = vector.extract_strided_slice %85 {offsets = [0, 64], sizes = [1, 64], strides = [1, 1]} : vector<1x128xf32> to vector<1x64xf32>
    %88 = vector.extract_strided_slice %72 {offsets = [0, 128], sizes = [1, 64], strides = [1, 1]} : vector<1x192xf32> to vector<1x64xf32>
    %89 = vector.extract_strided_slice %75 {offsets = [0, 128], sizes = [1, 64], strides = [1, 1]} : vector<1x192xf32> to vector<1x64xf32>
    %90 = arith.mulf %87, %89 : vector<1x64xf32>
    %91 = arith.addf %88, %90 : vector<1x64xf32>
    %92 = math.tanh %91 : vector<1x64xf32>
    %cst_30 = arith.constant 1.000000e+00 : f32
    %93 = vector.broadcast %cst_30 : f32 to vector<1x64xf32>
    %94 = arith.subf %93, %86 : vector<1x64xf32>
    %95 = arith.mulf %94, %92 : vector<1x64xf32>
    %96 = arith.mulf %86, %67 : vector<1x64xf32>
    %97 = arith.addf %95, %96 : vector<1x64xf32>
    %98 = vector.extract_strided_slice %97 {offsets = [0, 0], sizes = [1, 32], strides = [1, 1]} : vector<1x64xf32> to vector<1x32xf32>
    %c2_31 = arith.constant 2 : index
    %c0_32 = arith.constant 0 : index
    %99 = vector.load %arg4[%c2_31, %c0_32] : memref<8x64xf32, #tpu.memory_space<vmem>>, vector<1x32xf32>
    tpu.vector_store %arg4[%c2_31, %c0_32], %98 {strides = array<i32>} : memref<8x64xf32, #tpu.memory_space<vmem>>, vector<1x32xf32>,
    %100 = vector.extract_strided_slice %97 {offsets = [0, 32], sizes = [1, 32], strides = [1, 1]} : vector<1x64xf32> to vector<1x32xf32>
    %c5 = arith.constant 5 : index
    %c32_33 = arith.constant 32 : index
    %101 = vector.load %arg4[%c5, %c32_33] : memref<8x64xf32, #tpu.memory_space<vmem>>, vector<1x32xf32>
    tpu.vector_store %arg4[%c5, %c32_33], %100 {strides = array<i32>} : memref<8x64xf32, #tpu.memory_space<vmem>>, vector<1x32xf32>,
    %102 = vector.extract_strided_slice %10 {offsets = [3, 0], sizes = [1, 192], strides = [1, 1]} : vector<8x192xf32> to vector<1x192xf32>
    %103 = arith.truncf %97 : vector<1x64xf32> to vector<1x64xbf16>
    %cst_34 = arith.constant dense<0.000000e+00> : vector<1x192xf32>
    %104 = tpu.matmul %103, %1, %cst_34 {dimension_numbers = #tpu.dot_dimension_numbers<[1], [0], [0], [1], [0, 0, 1, 1], [], []>} : vector<1x64xbf16>, vector<64x192xbf16>, vector<1x192xf32> -> vector<1x192xf32>
    %105 = arith.addf %104, %4 : vector<1x192xf32>
    %106 = vector.extract_strided_slice %102 {offsets = [0, 0], sizes = [1, 128], strides = [1, 1]} : vector<1x192xf32> to vector<1x128xf32>
    %107 = vector.extract_strided_slice %105 {offsets = [0, 0], sizes = [1, 128], strides = [1, 1]} : vector<1x192xf32> to vector<1x128xf32>
    %108 = arith.addf %106, %107 : vector<1x128xf32>
    %cst_35 = arith.constant 5.000000e-01 : f32
    %109 = vector.broadcast %cst_35 : f32 to vector<1x128xf32>
    %110 = arith.mulf %109, %108 : vector<1x128xf32>
    %111 = math.tanh %110 : vector<1x128xf32>
    %cst_36 = arith.constant 1.000000e+00 : f32
    %112 = vector.broadcast %cst_36 : f32 to vector<1x128xf32>
    %113 = arith.addf %111, %112 : vector<1x128xf32>
    %cst_37 = arith.constant 5.000000e-01 : f32
    %114 = vector.broadcast %cst_37 : f32 to vector<1x128xf32>
    %115 = arith.mulf %114, %113 : vector<1x128xf32>
    %116 = vector.extract_strided_slice %115 {offsets = [0, 0], sizes = [1, 64], strides = [1, 1]} : vector<1x128xf32> to vector<1x64xf32>
    %117 = vector.extract_strided_slice %115 {offsets = [0, 64], sizes = [1, 64], strides = [1, 1]} : vector<1x128xf32> to vector<1x64xf32>
    %118 = vector.extract_strided_slice %102 {offsets = [0, 128], sizes = [1, 64], strides = [1, 1]} : vector<1x192xf32> to vector<1x64xf32>
    %119 = vector.extract_strided_slice %105 {offsets = [0, 128], sizes = [1, 64], strides = [1, 1]} : vector<1x192xf32> to vector<1x64xf32>
    %120 = arith.mulf %117, %119 : vector<1x64xf32>
    %121 = arith.addf %118, %120 : vector<1x64xf32>
    %122 = math.tanh %121 : vector<1x64xf32>
    %cst_38 = arith.constant 1.000000e+00 : f32
    %123 = vector.broadcast %cst_38 : f32 to vector<1x64xf32>
    %124 = arith.subf %123, %116 : vector<1x64xf32>
    %125 = arith.mulf %124, %122 : vector<1x64xf32>
    %126 = arith.mulf %116, %97 : vector<1x64xf32>
    %127 = arith.addf %125, %126 : vector<1x64xf32>
    %128 = vector.extract_strided_slice %127 {offsets = [0, 0], sizes = [1, 32], strides = [1, 1]} : vector<1x64xf32> to vector<1x32xf32>
    %c3 = arith.constant 3 : index
    %c0_39 = arith.constant 0 : index
    %129 = vector.load %arg4[%c3, %c0_39] : memref<8x64xf32, #tpu.memory_space<vmem>>, vector<1x32xf32>
    tpu.vector_store %arg4[%c3, %c0_39], %128 {strides = array<i32>} : memref<8x64xf32, #tpu.memory_space<vmem>>, vector<1x32xf32>,
    %130 = vector.extract_strided_slice %127 {offsets = [0, 32], sizes = [1, 32], strides = [1, 1]} : vector<1x64xf32> to vector<1x32xf32>
    %c4 = arith.constant 4 : index
    %c32_40 = arith.constant 32 : index
    %131 = vector.load %arg4[%c4, %c32_40] : memref<8x64xf32, #tpu.memory_space<vmem>>, vector<1x32xf32>
    tpu.vector_store %arg4[%c4, %c32_40], %130 {strides = array<i32>} : memref<8x64xf32, #tpu.memory_space<vmem>>, vector<1x32xf32>,
    %132 = vector.extract_strided_slice %10 {offsets = [4, 0], sizes = [1, 192], strides = [1, 1]} : vector<8x192xf32> to vector<1x192xf32>
    %133 = arith.truncf %127 : vector<1x64xf32> to vector<1x64xbf16>
    %cst_41 = arith.constant dense<0.000000e+00> : vector<1x192xf32>
    %134 = tpu.matmul %133, %1, %cst_41 {dimension_numbers = #tpu.dot_dimension_numbers<[1], [0], [0], [1], [0, 0, 1, 1], [], []>} : vector<1x64xbf16>, vector<64x192xbf16>, vector<1x192xf32> -> vector<1x192xf32>
    %135 = arith.addf %134, %4 : vector<1x192xf32>
    %136 = vector.extract_strided_slice %132 {offsets = [0, 0], sizes = [1, 128], strides = [1, 1]} : vector<1x192xf32> to vector<1x128xf32>
    %137 = vector.extract_strided_slice %135 {offsets = [0, 0], sizes = [1, 128], strides = [1, 1]} : vector<1x192xf32> to vector<1x128xf32>
    %138 = arith.addf %136, %137 : vector<1x128xf32>
    %cst_42 = arith.constant 5.000000e-01 : f32
    %139 = vector.broadcast %cst_42 : f32 to vector<1x128xf32>
    %140 = arith.mulf %139, %138 : vector<1x128xf32>
    %141 = math.tanh %140 : vector<1x128xf32>
    %cst_43 = arith.constant 1.000000e+00 : f32
    %142 = vector.broadcast %cst_43 : f32 to vector<1x128xf32>
    %143 = arith.addf %141, %142 : vector<1x128xf32>
    %cst_44 = arith.constant 5.000000e-01 : f32
    %144 = vector.broadcast %cst_44 : f32 to vector<1x128xf32>
    %145 = arith.mulf %144, %143 : vector<1x128xf32>
    %146 = vector.extract_strided_slice %145 {offsets = [0, 0], sizes = [1, 64], strides = [1, 1]} : vector<1x128xf32> to vector<1x64xf32>
    %147 = vector.extract_strided_slice %145 {offsets = [0, 64], sizes = [1, 64], strides = [1, 1]} : vector<1x128xf32> to vector<1x64xf32>
    %148 = vector.extract_strided_slice %132 {offsets = [0, 128], sizes = [1, 64], strides = [1, 1]} : vector<1x192xf32> to vector<1x64xf32>
    %149 = vector.extract_strided_slice %135 {offsets = [0, 128], sizes = [1, 64], strides = [1, 1]} : vector<1x192xf32> to vector<1x64xf32>
    %150 = arith.mulf %147, %149 : vector<1x64xf32>
    %151 = arith.addf %148, %150 : vector<1x64xf32>
    %152 = math.tanh %151 : vector<1x64xf32>
    %cst_45 = arith.constant 1.000000e+00 : f32
    %153 = vector.broadcast %cst_45 : f32 to vector<1x64xf32>
    %154 = arith.subf %153, %146 : vector<1x64xf32>
    %155 = arith.mulf %154, %152 : vector<1x64xf32>
    %156 = arith.mulf %146, %127 : vector<1x64xf32>
    %157 = arith.addf %155, %156 : vector<1x64xf32>
    %158 = vector.extract_strided_slice %157 {offsets = [0, 0], sizes = [1, 32], strides = [1, 1]} : vector<1x64xf32> to vector<1x32xf32>
    %c4_46 = arith.constant 4 : index
    %c0_47 = arith.constant 0 : index
    %159 = vector.load %arg4[%c4_46, %c0_47] : memref<8x64xf32, #tpu.memory_space<vmem>>, vector<1x32xf32>
    tpu.vector_store %arg4[%c4_46, %c0_47], %158 {strides = array<i32>} : memref<8x64xf32, #tpu.memory_space<vmem>>, vector<1x32xf32>,
    %160 = vector.extract_strided_slice %157 {offsets = [0, 32], sizes = [1, 32], strides = [1, 1]} : vector<1x64xf32> to vector<1x32xf32>
    %c3_48 = arith.constant 3 : index
    %c32_49 = arith.constant 32 : index
    %161 = vector.load %arg4[%c3_48, %c32_49] : memref<8x64xf32, #tpu.memory_space<vmem>>, vector<1x32xf32>
    tpu.vector_store %arg4[%c3_48, %c32_49], %160 {strides = array<i32>} : memref<8x64xf32, #tpu.memory_space<vmem>>, vector<1x32xf32>,
    %162 = vector.extract_strided_slice %10 {offsets = [5, 0], sizes = [1, 192], strides = [1, 1]} : vector<8x192xf32> to vector<1x192xf32>
    %163 = arith.truncf %157 : vector<1x64xf32> to vector<1x64xbf16>
    %cst_50 = arith.constant dense<0.000000e+00> : vector<1x192xf32>
    %164 = tpu.matmul %163, %1, %cst_50 {dimension_numbers = #tpu.dot_dimension_numbers<[1], [0], [0], [1], [0, 0, 1, 1], [], []>} : vector<1x64xbf16>, vector<64x192xbf16>, vector<1x192xf32> -> vector<1x192xf32>
    %165 = arith.addf %164, %4 : vector<1x192xf32>
    %166 = vector.extract_strided_slice %162 {offsets = [0, 0], sizes = [1, 128], strides = [1, 1]} : vector<1x192xf32> to vector<1x128xf32>
    %167 = vector.extract_strided_slice %165 {offsets = [0, 0], sizes = [1, 128], strides = [1, 1]} : vector<1x192xf32> to vector<1x128xf32>
    %168 = arith.addf %166, %167 : vector<1x128xf32>
    %cst_51 = arith.constant 5.000000e-01 : f32
    %169 = vector.broadcast %cst_51 : f32 to vector<1x128xf32>
    %170 = arith.mulf %169, %168 : vector<1x128xf32>
    %171 = math.tanh %170 : vector<1x128xf32>
    %cst_52 = arith.constant 1.000000e+00 : f32
    %172 = vector.broadcast %cst_52 : f32 to vector<1x128xf32>
    %173 = arith.addf %171, %172 : vector<1x128xf32>
    %cst_53 = arith.constant 5.000000e-01 : f32
    %174 = vector.broadcast %cst_53 : f32 to vector<1x128xf32>
    %175 = arith.mulf %174, %173 : vector<1x128xf32>
    %176 = vector.extract_strided_slice %175 {offsets = [0, 0], sizes = [1, 64], strides = [1, 1]} : vector<1x128xf32> to vector<1x64xf32>
    %177 = vector.extract_strided_slice %175 {offsets = [0, 64], sizes = [1, 64], strides = [1, 1]} : vector<1x128xf32> to vector<1x64xf32>
    %178 = vector.extract_strided_slice %162 {offsets = [0, 128], sizes = [1, 64], strides = [1, 1]} : vector<1x192xf32> to vector<1x64xf32>
    %179 = vector.extract_strided_slice %165 {offsets = [0, 128], sizes = [1, 64], strides = [1, 1]} : vector<1x192xf32> to vector<1x64xf32>
    %180 = arith.mulf %177, %179 : vector<1x64xf32>
    %181 = arith.addf %178, %180 : vector<1x64xf32>
    %182 = math.tanh %181 : vector<1x64xf32>
    %cst_54 = arith.constant 1.000000e+00 : f32
    %183 = vector.broadcast %cst_54 : f32 to vector<1x64xf32>
    %184 = arith.subf %183, %176 : vector<1x64xf32>
    %185 = arith.mulf %184, %182 : vector<1x64xf32>
    %186 = arith.mulf %176, %157 : vector<1x64xf32>
    %187 = arith.addf %185, %186 : vector<1x64xf32>
    %188 = vector.extract_strided_slice %187 {offsets = [0, 0], sizes = [1, 32], strides = [1, 1]} : vector<1x64xf32> to vector<1x32xf32>
    %c5_55 = arith.constant 5 : index
    %c0_56 = arith.constant 0 : index
    %189 = vector.load %arg4[%c5_55, %c0_56] : memref<8x64xf32, #tpu.memory_space<vmem>>, vector<1x32xf32>
    tpu.vector_store %arg4[%c5_55, %c0_56], %188 {strides = array<i32>} : memref<8x64xf32, #tpu.memory_space<vmem>>, vector<1x32xf32>,
    %190 = vector.extract_strided_slice %187 {offsets = [0, 32], sizes = [1, 32], strides = [1, 1]} : vector<1x64xf32> to vector<1x32xf32>
    %c2_57 = arith.constant 2 : index
    %c32_58 = arith.constant 32 : index
    %191 = vector.load %arg4[%c2_57, %c32_58] : memref<8x64xf32, #tpu.memory_space<vmem>>, vector<1x32xf32>
    tpu.vector_store %arg4[%c2_57, %c32_58], %190 {strides = array<i32>} : memref<8x64xf32, #tpu.memory_space<vmem>>, vector<1x32xf32>,
    %192 = vector.extract_strided_slice %10 {offsets = [6, 0], sizes = [1, 192], strides = [1, 1]} : vector<8x192xf32> to vector<1x192xf32>
    %193 = arith.truncf %187 : vector<1x64xf32> to vector<1x64xbf16>
    %cst_59 = arith.constant dense<0.000000e+00> : vector<1x192xf32>
    %194 = tpu.matmul %193, %1, %cst_59 {dimension_numbers = #tpu.dot_dimension_numbers<[1], [0], [0], [1], [0, 0, 1, 1], [], []>} : vector<1x64xbf16>, vector<64x192xbf16>, vector<1x192xf32> -> vector<1x192xf32>
    %195 = arith.addf %194, %4 : vector<1x192xf32>
    %196 = vector.extract_strided_slice %192 {offsets = [0, 0], sizes = [1, 128], strides = [1, 1]} : vector<1x192xf32> to vector<1x128xf32>
    %197 = vector.extract_strided_slice %195 {offsets = [0, 0], sizes = [1, 128], strides = [1, 1]} : vector<1x192xf32> to vector<1x128xf32>
    %198 = arith.addf %196, %197 : vector<1x128xf32>
    %cst_60 = arith.constant 5.000000e-01 : f32
    %199 = vector.broadcast %cst_60 : f32 to vector<1x128xf32>
    %200 = arith.mulf %199, %198 : vector<1x128xf32>
    %201 = math.tanh %200 : vector<1x128xf32>
    %cst_61 = arith.constant 1.000000e+00 : f32
    %202 = vector.broadcast %cst_61 : f32 to vector<1x128xf32>
    %203 = arith.addf %201, %202 : vector<1x128xf32>
    %cst_62 = arith.constant 5.000000e-01 : f32
    %204 = vector.broadcast %cst_62 : f32 to vector<1x128xf32>
    %205 = arith.mulf %204, %203 : vector<1x128xf32>
    %206 = vector.extract_strided_slice %205 {offsets = [0, 0], sizes = [1, 64], strides = [1, 1]} : vector<1x128xf32> to vector<1x64xf32>
    %207 = vector.extract_strided_slice %205 {offsets = [0, 64], sizes = [1, 64], strides = [1, 1]} : vector<1x128xf32> to vector<1x64xf32>
    %208 = vector.extract_strided_slice %192 {offsets = [0, 128], sizes = [1, 64], strides = [1, 1]} : vector<1x192xf32> to vector<1x64xf32>
    %209 = vector.extract_strided_slice %195 {offsets = [0, 128], sizes = [1, 64], strides = [1, 1]} : vector<1x192xf32> to vector<1x64xf32>
    %210 = arith.mulf %207, %209 : vector<1x64xf32>
    %211 = arith.addf %208, %210 : vector<1x64xf32>
    %212 = math.tanh %211 : vector<1x64xf32>
    %cst_63 = arith.constant 1.000000e+00 : f32
    %213 = vector.broadcast %cst_63 : f32 to vector<1x64xf32>
    %214 = arith.subf %213, %206 : vector<1x64xf32>
    %215 = arith.mulf %214, %212 : vector<1x64xf32>
    %216 = arith.mulf %206, %187 : vector<1x64xf32>
    %217 = arith.addf %215, %216 : vector<1x64xf32>
    %218 = vector.extract_strided_slice %217 {offsets = [0, 0], sizes = [1, 32], strides = [1, 1]} : vector<1x64xf32> to vector<1x32xf32>
    %c6_64 = arith.constant 6 : index
    %c0_65 = arith.constant 0 : index
    %219 = vector.load %arg4[%c6_64, %c0_65] : memref<8x64xf32, #tpu.memory_space<vmem>>, vector<1x32xf32>
    tpu.vector_store %arg4[%c6_64, %c0_65], %218 {strides = array<i32>} : memref<8x64xf32, #tpu.memory_space<vmem>>, vector<1x32xf32>,
    %220 = vector.extract_strided_slice %217 {offsets = [0, 32], sizes = [1, 32], strides = [1, 1]} : vector<1x64xf32> to vector<1x32xf32>
    %c1_66 = arith.constant 1 : index
    %c32_67 = arith.constant 32 : index
    %221 = vector.load %arg4[%c1_66, %c32_67] : memref<8x64xf32, #tpu.memory_space<vmem>>, vector<1x32xf32>
    tpu.vector_store %arg4[%c1_66, %c32_67], %220 {strides = array<i32>} : memref<8x64xf32, #tpu.memory_space<vmem>>, vector<1x32xf32>,
    %222 = vector.extract_strided_slice %10 {offsets = [7, 0], sizes = [1, 192], strides = [1, 1]} : vector<8x192xf32> to vector<1x192xf32>
    %223 = arith.truncf %217 : vector<1x64xf32> to vector<1x64xbf16>
    %cst_68 = arith.constant dense<0.000000e+00> : vector<1x192xf32>
    %224 = tpu.matmul %223, %1, %cst_68 {dimension_numbers = #tpu.dot_dimension_numbers<[1], [0], [0], [1], [0, 0, 1, 1], [], []>} : vector<1x64xbf16>, vector<64x192xbf16>, vector<1x192xf32> -> vector<1x192xf32>
    %225 = arith.addf %224, %4 : vector<1x192xf32>
    %226 = vector.extract_strided_slice %222 {offsets = [0, 0], sizes = [1, 128], strides = [1, 1]} : vector<1x192xf32> to vector<1x128xf32>
    %227 = vector.extract_strided_slice %225 {offsets = [0, 0], sizes = [1, 128], strides = [1, 1]} : vector<1x192xf32> to vector<1x128xf32>
    %228 = arith.addf %226, %227 : vector<1x128xf32>
    %cst_69 = arith.constant 5.000000e-01 : f32
    %229 = vector.broadcast %cst_69 : f32 to vector<1x128xf32>
    %230 = arith.mulf %229, %228 : vector<1x128xf32>
    %231 = math.tanh %230 : vector<1x128xf32>
    %cst_70 = arith.constant 1.000000e+00 : f32
    %232 = vector.broadcast %cst_70 : f32 to vector<1x128xf32>
    %233 = arith.addf %231, %232 : vector<1x128xf32>
    %cst_71 = arith.constant 5.000000e-01 : f32
    %234 = vector.broadcast %cst_71 : f32 to vector<1x128xf32>
    %235 = arith.mulf %234, %233 : vector<1x128xf32>
    %236 = vector.extract_strided_slice %235 {offsets = [0, 0], sizes = [1, 64], strides = [1, 1]} : vector<1x128xf32> to vector<1x64xf32>
    %237 = vector.extract_strided_slice %235 {offsets = [0, 64], sizes = [1, 64], strides = [1, 1]} : vector<1x128xf32> to vector<1x64xf32>
    %238 = vector.extract_strided_slice %222 {offsets = [0, 128], sizes = [1, 64], strides = [1, 1]} : vector<1x192xf32> to vector<1x64xf32>
    %239 = vector.extract_strided_slice %225 {offsets = [0, 128], sizes = [1, 64], strides = [1, 1]} : vector<1x192xf32> to vector<1x64xf32>
    %240 = arith.mulf %237, %239 : vector<1x64xf32>
    %241 = arith.addf %238, %240 : vector<1x64xf32>
    %242 = math.tanh %241 : vector<1x64xf32>
    %cst_72 = arith.constant 1.000000e+00 : f32
    %243 = vector.broadcast %cst_72 : f32 to vector<1x64xf32>
    %244 = arith.subf %243, %236 : vector<1x64xf32>
    %245 = arith.mulf %244, %242 : vector<1x64xf32>
    %246 = arith.mulf %236, %217 : vector<1x64xf32>
    %247 = arith.addf %245, %246 : vector<1x64xf32>
    %248 = vector.extract_strided_slice %247 {offsets = [0, 0], sizes = [1, 32], strides = [1, 1]} : vector<1x64xf32> to vector<1x32xf32>
    %c7_73 = arith.constant 7 : index
    %c0_74 = arith.constant 0 : index
    %249 = vector.load %arg4[%c7_73, %c0_74] : memref<8x64xf32, #tpu.memory_space<vmem>>, vector<1x32xf32>
    tpu.vector_store %arg4[%c7_73, %c0_74], %248 {strides = array<i32>} : memref<8x64xf32, #tpu.memory_space<vmem>>, vector<1x32xf32>,
    %250 = vector.extract_strided_slice %247 {offsets = [0, 32], sizes = [1, 32], strides = [1, 1]} : vector<1x64xf32> to vector<1x32xf32>
    %c0_75 = arith.constant 0 : index
    %c32_76 = arith.constant 32 : index
    %251 = vector.load %arg4[%c0_75, %c32_76] : memref<8x64xf32, #tpu.memory_space<vmem>>, vector<1x32xf32>
    tpu.vector_store %arg4[%c0_75, %c32_76], %250 {strides = array<i32>} : memref<8x64xf32, #tpu.memory_space<vmem>>, vector<1x32xf32>,
    %c0_77 = arith.constant 0 : index
    %c0_78 = arith.constant 0 : index
    %252 = vector.load %arg4[%c0_77, %c0_78] : memref<8x64xf32, #tpu.memory_space<vmem>>, vector<8x64xf32>
    %253 = arith.truncf %252 : vector<8x64xf32> to vector<8x64xbf16>
    %cst_79 = arith.constant dense<0.000000e+00> : vector<8x128xf32>
    %254 = tpu.matmul %253, %2, %cst_79 {dimension_numbers = #tpu.dot_dimension_numbers<[1], [0], [0], [1], [0, 0, 1, 1], [], []>} : vector<8x64xbf16>, vector<64x128xbf16>, vector<8x128xf32> -> vector<8x128xf32>
    %255 = vector.broadcast %5 : vector<1x128xf32> to vector<8x128xf32>
    %256 = arith.addf %254, %255 : vector<8x128xf32>
    %257 = vector.extract_strided_slice %256 {offsets = [0, 0], sizes = [8, 2], strides = [1, 1]} : vector<8x128xf32> to vector<8x2xf32>
    %cst_80 = arith.constant dense<0xFF800000> : vector<8xf32>
    %258 = vector.multi_reduction <maximumf>, %257, %cst_80 [1] : vector<8x2xf32> to vector<8xf32>
    %259 = vector.shape_cast %258 : vector<8xf32> to vector<8x1xf32>
    %260 = vector.broadcast %259 : vector<8x1xf32> to vector<8x2xf32>
    %261 = arith.subf %257, %260 : vector<8x2xf32>
    %262 = math.exp %261 : vector<8x2xf32>
    %cst_81 = arith.constant dense<0.000000e+00> : vector<8xf32>
    %263 = vector.multi_reduction <add>, %262, %cst_81 [1] : vector<8x2xf32> to vector<8xf32>
    %264 = vector.shape_cast %263 : vector<8xf32> to vector<8x1xf32>
    %265 = math.log %264 : vector<8x1xf32>
    %266 = arith.addf %259, %265 : vector<8x1xf32>
    %267 = vector.broadcast %266 : vector<8x1xf32> to vector<8x128xf32>
    %268 = arith.subf %256, %267 : vector<8x128xf32>
    %c0_82 = arith.constant 0 : index
    %c0_83 = arith.constant 0 : index
    %269 = vector.load %arg3[%c0_82, %c0_83] : memref<8x128xf32, #tpu.memory_space<vmem>>, vector<8x128xf32>
    tpu.vector_store %arg3[%c0_82, %c0_83], %268 {strides = array<i32>} : memref<8x128xf32, #tpu.memory_space<vmem>>, vector<8x128xf32>,
    return
  }
}

</mosaic_0001>

<llo_original>
// kernel: tpu_custom_call.1
$region0: #{tpu_custom_call.1}
  #allocation0 [shape = 'u32[]', space=smem, size = 0x4, offset = 0x4, fixed_abs, tag = 'smem constant byte address 0x4 - core index']
  #allocation1 [shape = 'u32[144,128]{1,0:T(1,128)}', space=vmem, size = 0x12000, scoped, tag = 'internal scratch']
  #allocation2 [shape = 'f32[8,64]{1,0:T(8,128)}', space=vmem, size = 0x1000, scoped, tag = 'scratch operand']
  %s0 = inlined_call_operand.hbm [shape: f32[8,32], index: 0, kind: input, shape index: {}]
  %s1 = inlined_call_operand.hbm [shape: bf16[160,192], index: 1, kind: input, shape index: {}]
  %s2 = inlined_call_operand.hbm [shape: f32[3,192], index: 2, kind: input, shape index: {}]
  %s3 = inlined_call_operand.hbm [shape: f32[8,128], index: 3, kind: output, shape index: {}]
  %s4 = sld [smem:[#allocation0]]
  $region34: #{tpu_custom_call.1} parent=0
    _
  %s6 = ssub.s32 1, %s4
  %s7 = scalar_select 0, %s6, %s4
  $region1: #{tpu_custom_call.1} parent=0
    #allocation3 [shape = 'u8[4096]{0}', space=vmem, size = 0x1000, scoped, tag = 'input window, operand 0, single buffered']
    #allocation4 [shape = 's32[1]{0}', space=sflag, size = 0x4, scoped, tag = 'scoped memory for tpu_custom_call.1']
    #allocation5 [shape = 's32[1]{0}', space=sflag, size = 0x4, scoped, tag = 'scoped memory for tpu_custom_call.1']
    #allocation6 [shape = 'u8[81920]{0}', space=vmem, size = 0x14000, scoped, tag = 'input window, operand 1, single buffered']
    #allocation7 [shape = 's32[1]{0}', space=sflag, size = 0x4, scoped, tag = 'scoped memory for tpu_custom_call.1']
    #allocation8 [shape = 'u8[4096]{0}', space=vmem, size = 0x1000, scoped, tag = 'input window, operand 2, single buffered']
    #allocation9 [shape = 'u8[4096]{0}', space=vmem, size = 0x1000, scoped, tag = 'output window, operand 0, single buffered']
    %8 = vsyncpa [#allocation4], 0
    %9 = vsyncpa [#allocation7], 0
    %10 = vsyncpa [#allocation5], 0
    // Predicated region
    $region2: #{tpu_custom_call.1} parent=1 // pred_check
      _
    $region3: #{tpu_custom_call.1} parent=1 // pred_check_branch
      %12 = sbr.rel (0) target = $region5
    $region4: #{tpu_custom_call.1} parent=1 // pred_region
      %s14 = ssub.s32 128, 128
      %15 = vsyncadd [#allocation4], %s14
      %s17 = sshll.u32 [#allocation3], 4
      %s18 = int_to_ptr.vmem [resolvable:$true] %s17
      %20 = dma.hbm_to_vmem [thread:$0]  %s0, 128, %s18, [#allocation4]
    $region5: #{tpu_custom_call.1} parent=1 // pred_fallthru
      _
    // Predicated region
    $region6: #{tpu_custom_call.1} parent=1 // pred_check
      _
    $region7: #{tpu_custom_call.1} parent=1 // pred_check_branch
      %22 = sbr.rel (0) target = $region9
    $region8: #{tpu_custom_call.1} parent=1 // pred_region
      %s24 = ssub.s32 2560, 2560
      %25 = vsyncadd [#allocation7], %s24
      %s26 = sshll.u32 [#allocation6], 4
      %s27 = int_to_ptr.vmem [resolvable:$true] %s26
      %32 = dma.hbm_to_vmem [thread:$0]  %s1, 2560, %s27, [#allocation7], 128, 128, 8
    $region9: #{tpu_custom_call.1} parent=1 // pred_fallthru
      _
    // Predicated region
    $region10: #{tpu_custom_call.1} parent=1 // pred_check
      _
    $region11: #{tpu_custom_call.1} parent=1 // pred_check_branch
      %34 = sbr.rel (0) target = $region13
    $region12: #{tpu_custom_call.1} parent=1 // pred_region
      %s36 = ssub.s32 128, 128
      %37 = vsyncadd [#allocation7], %s36
      %s39 = sshll.u32 [#allocation8], 4
      %s40 = int_to_ptr.vmem [resolvable:$true] %s39
      %42 = dma.hbm_to_vmem [thread:$0]  %s2, 128, %s40, [#allocation7]
    $region13: #{tpu_custom_call.1} parent=1 // pred_fallthru
      _
    // Predicated region
    $region14: #{tpu_custom_call.1} parent=1 // pred_check
      _
    $region15: #{tpu_custom_call.1} parent=1 // pred_check_branch
      %44 = sbr.rel (0) target = $region17
    $region16: #{tpu_custom_call.1} parent=1 // pred_region
      %45 = dma.done [#allocation4], 128
    $region17: #{tpu_custom_call.1} parent=1 // pred_fallthru
      _
    // Predicated region
    $region18: #{tpu_custom_call.1} parent=1 // pred_check
      _
    $region19: #{tpu_custom_call.1} parent=1 // pred_check_branch
      %47 = sbr.rel (0) target = $region21
    $region20: #{tpu_custom_call.1} parent=1 // pred_region
      %48 = dma.done [#allocation7], 2560
    $region21: #{tpu_custom_call.1} parent=1 // pred_fallthru
      _
    // Predicated region
    $region22: #{tpu_custom_call.1} parent=1 // pred_check
      _
    $region23: #{tpu_custom_call.1} parent=1 // pred_check_branch
      %50 = sbr.rel (0) target = $region25
    $region24: #{tpu_custom_call.1} parent=1 // pred_region
      %51 = dma.done [#allocation7], 128
    $region25: #{tpu_custom_call.1} parent=1 // pred_fallthru
      _
    %v53 = vld [vmem:[#allocation6] sm:$0xff]
    %v54 = vld [vmem:[#allocation6 + $0x8] sm:$0xff]
    %v55 = vld [vmem:[#allocation6 + $0x10] sm:$0xff]
    %v56 = vld [vmem:[#allocation6 + $0x18] sm:$0xff]
    %v57 = vld [vmem:[#allocation6 + $0x20] sm:$0xff]
    %v58 = vld [vmem:[#allocation6 + $0x28] sm:$0xff]
    %v59 = vld [vmem:[#allocation6 + $0x30] sm:$0xff]
    %v60 = vld [vmem:[#allocation6 + $0x38] sm:$0xff]
    %v61 = vld [vmem:[#allocation6 + $0x40] sm:$0xff]
    %v62 = vld [vmem:[#allocation6 + $0x48] sm:$0xff]
    %v63 = vld [vmem:[#allocation6 + $0x50] sm:$0xff]
    %v64 = vld [vmem:[#allocation6 + $0x58] sm:$0xff]
    %v65 = vld [vmem:[#allocation6 + $0x60] sm:$0xf]
    %v66 = vld [vmem:[#allocation6 + $0x68] sm:$0xf]
    %v67 = vld [vmem:[#allocation6 + $0x70] sm:$0xf]
    %v68 = vld [vmem:[#allocation6 + $0x78] sm:$0xf]
    %v69 = vld [vmem:[#allocation6 + $0x80] sm:$0xf]
    %v70 = vld [vmem:[#allocation6 + $0x88] sm:$0xf]
    %v71 = vld [vmem:[#allocation6 + $0x90] sm:$0xf]
    %v72 = vld [vmem:[#allocation6 + $0x98] sm:$0xf]
    %v73 = vld [vmem:[#allocation8] ss:$4 sm:$0x3]
    %s74 = scalar_lea.vmem [#allocation8], 1
    %v75 = vld [vmem:[%s74] ss:$4 sm:$0x3]
    %v76 = vld [vmem:[#allocation8 + $0x2] sm:$0x1]
    %v77 = vld [vmem:[#allocation3] sm:$0xff]
    %v78 = vpack.c.bf16 %v77, %v77
    %v80 = vlaneseq
    %v81 = vshrl.u32 %v80, 7
    %v82 = vsub.s32 0, %v81
    %v83 = vrot.slane %v73, %v82
    %v84 = vlaneseq
    %v85 = vshrl.u32 %v84, 7
    %v86 = vsub.s32 1, %v85
    %v87 = vrot.slane %v73, %v86
    %v94 = vunpack.c.l.b16 %v53
    %v95 = vunpack.c.h.b16 %v53
    %v96 = vunpack.c.l.b16 %v54
    %v97 = vunpack.c.h.b16 %v54
    %v98 = vunpack.c.l.b16 %v55
    %v99 = vunpack.c.h.b16 %v55
    %v100 = vunpack.c.l.b16 %v56
    %v101 = vunpack.c.h.b16 %v56
    %v102 = vpack.c.b16 %v96, %v94
    %v103 = vpack.c.b16 %v97, %v95
    %v104 = vpack.c.b16 %v100, %v98
    %v105 = vpack.c.b16 %v101, %v99
    %vm110 = vcmask 261120
    %v112 = vsel %vm110, %v78, 0
    %114 = vmatprep.subr.bf16.mxu0 %v103
    %115 = vmatpush1.bf16.msra.mxu0 %v102
    %116 = vmatprep.subr.bf16.mxu0 %v105
    %117 = vmatpush1.bf16.msra.mxu0 %v104
    %118 = vmatprep.subr.bf16.mxu0 0
    %119 = vmatpush1.bf16.msra.mxu0 0
    %120 = vmatprep.subr.bf16.mxu0 0
    %121 = vmatpush1.bf16.msra.mxu0 0
    %122 = vmatprep.subr.bf16.mxu0 0
    %123 = vmatpush1.bf16.msra.mxu0 0
    %124 = vmatprep.subr.bf16.mxu0 0
    %125 = vmatpush1.bf16.msra.mxu0 0
    %126 = vmatprep.subr.bf16.mxu0 0
    %127 = vmatpush1.bf16.msra.mxu0 0
    %128 = vmatprep.subr.bf16.mxu0 0
    %129 = vmatpush1.bf16.msra.mxu0 0
    %130 = vmatprep.subr.bf16.mxu0 0
    %131 = vmatpush1.bf16.msra.mxu0 0
    %132 = vmatprep.subr.bf16.mxu0 0
    %133 = vmatpush1.bf16.msra.mxu0 0
    %134 = vmatprep.subr.bf16.mxu0 0
    %135 = vmatpush1.bf16.msra.mxu0 0
    %136 = vmatprep.subr.bf16.mxu0 0
    %137 = vmatpush1.bf16.msra.mxu0 0
    %138 = vmatprep.subr.bf16.mxu0 0
    %139 = vmatpush1.bf16.msra.mxu0 0
    %140 = vmatprep.subr.bf16.mxu0 0
    %141 = vmatpush1.bf16.msra.mxu0 0
    %142 = vmatprep.subr.bf16.mxu0 0
    %143 = vmatpush1.bf16.msra.mxu0 0
    %144 = vmatprep.subr.bf16.mxu0 0
    %145 = vmatpush1.bf16.msra.mxu0 0
    %146 = vmatprep.mubr.bf16.mxu0 0
    %147 = vmatmul.mubr.bf16.gmra.mrb[0].mxu0 %v112
    %v148 = vpop.f32.mrb[0].mxu0
    %v149 = vadd.f32 %v83, %v148
    %v150 = vpop.f32.mrb[0].mxu0
    %v151 = vadd.f32 %v87, %v150
    %v152 = vpop.f32.mrb[0].mxu0
    %v153 = vpop.f32.mrb[0].mxu0
    %154 = vdwg.mxu0
    %v163 = vunpack.c.l.b16 %v57
    %v164 = vunpack.c.h.b16 %v57
    %v165 = vunpack.c.l.b16 %v58
    %v166 = vunpack.c.h.b16 %v58
    %v167 = vunpack.c.l.b16 %v59
    %v168 = vunpack.c.h.b16 %v59
    %v169 = vunpack.c.l.b16 %v60
    %v170 = vunpack.c.h.b16 %v60
    %v171 = vunpack.c.l.b16 %v61
    %v172 = vunpack.c.h.b16 %v61
    %v173 = vunpack.c.l.b16 %v62
    %v174 = vunpack.c.h.b16 %v62
    %v175 = vunpack.c.l.b16 %v63
    %v176 = vunpack.c.h.b16 %v63
    %v177 = vunpack.c.l.b16 %v64
    %v178 = vunpack.c.h.b16 %v64
    %v179 = vpack.c.b16 %v165, %v163
    %v180 = vpack.c.b16 %v166, %v164
    %v181 = vpack.c.b16 %v169, %v167
    %v182 = vpack.c.b16 %v170, %v168
    %v183 = vpack.c.b16 %v173, %v171
    %v184 = vpack.c.b16 %v174, %v172
    %v185 = vpack.c.b16 %v177, %v175
    %v186 = vpack.c.b16 %v178, %v176
    %v196 = vlaneseq
    %v197 = vshrl.u32 %v196, 7
    %v198 = vsub.s32 0, %v197
    %v199 = vrot.slane %v75, %v198
    %v200 = vlaneseq
    %v201 = vshrl.u32 %v200, 7
    %v202 = vsub.s32 1, %v201
    %v203 = vrot.slane %v75, %v202
    %vm206 = vcmask 523264
    %v208 = vsel %vm206, 0, 0
    %210 = vmatprep.subr.bf16.mxu0 %v180
    %211 = vmatpush1.bf16.msra.mxu0 %v179
    %212 = vmatprep.subr.bf16.mxu0 %v182
    %213 = vmatpush1.bf16.msra.mxu0 %v181
    %214 = vmatprep.subr.bf16.mxu0 %v184
    %215 = vmatpush1.bf16.msra.mxu0 %v183
    %216 = vmatprep.subr.bf16.mxu0 %v186
    %217 = vmatpush1.bf16.msra.mxu0 %v185
    %218 = vmatprep.subr.bf16.mxu0 0
    %219 = vmatpush1.bf16.msra.mxu0 0
    %220 = vmatprep.subr.bf16.mxu0 0
    %221 = vmatpush1.bf16.msra.mxu0 0
    %222 = vmatprep.subr.bf16.mxu0 0
    %223 = vmatpush1.bf16.msra.mxu0 0
    %224 = vmatprep.subr.bf16.mxu0 0
    %225 = vmatpush1.bf16.msra.mxu0 0
    %226 = vmatprep.subr.bf16.mxu0 0
    %227 = vmatpush1.bf16.msra.mxu0 0
    %228 = vmatprep.subr.bf16.mxu0 0
    %229 = vmatpush1.bf16.msra.mxu0 0
    %230 = vmatprep.subr.bf16.mxu0 0
    %231 = vmatpush1.bf16.msra.mxu0 0
    %232 = vmatprep.subr.bf16.mxu0 0
    %233 = vmatpush1.bf16.msra.mxu0 0
    %234 = vmatprep.subr.bf16.mxu0 0
    %235 = vmatpush1.bf16.msra.mxu0 0
    %236 = vmatprep.subr.bf16.mxu0 0
    %237 = vmatpush1.bf16.msra.mxu0 0
    %238 = vmatprep.subr.bf16.mxu0 0
    %239 = vmatpush1.bf16.msra.mxu0 0
    %240 = vmatprep.subr.bf16.mxu0 0
    %241 = vmatpush1.bf16.msra.mxu0 0
    %242 = vmatprep.mubr.bf16.mxu0 0
    %243 = vmatmul.mubr.bf16.gmra.mrb[0].mxu0 %v208
    %v244 = vpop.f32.mrb[0].mxu0
    %v245 = vadd.f32 %v199, %v244
    %v246 = vpop.f32.mrb[0].mxu0
    %v247 = vadd.f32 %v203, %v246
    %v248 = vpop.f32.mrb[0].mxu0
    %v249 = vpop.f32.mrb[0].mxu0
    %250 = vdwg.mxu0
    %v251 = vadd.f32 %v149, %v245
    %v252 = vmul.f32 %v251, 0.5
    %v253 = vtanh.pop %v252
    %v254 = vadd.f32 %v253, 1.0
    %v255 = vmul.f32 %v254, 0.5
    %257 = vrot.lane.b32.xlu0 %v247, 64
    %v258 = vpop.permute.xlu0 %257
    %v260 = vmul.f32 %v255, %v258
    %262 = vrot.lane.b32.xlu0 %v260, 64
    %v263 = vpop.permute.xlu0 %262
    %v265 = vadd.f32 %v151, %v263
    %v266 = vtanh.pop %v265
    %v267 = vsub.f32 1.0, %v255
    %v268 = vmul.f32 %v267, %v266
    %v269 = vmul.f32 %v255, 0.0
    %v270 = vadd.f32 %v268, %v269
    %vm271 = vcmask 253952
    %272 = vst.msk [vmem:[#allocation2] sm:$0x1] %vm271, %v270
    %vm273 = vcmask 516352
    %274 = vst.msk [vmem:[#allocation2 + $0x7] sm:$0x1] %vm273, %v270
    %v275 = vpack.c.bf16 %v270, %v270
    %v277 = vsel %vm206, %v275, 0
    %279 = vmatprep.subr.bf16.mxu0 %v180
    %280 = vmatpush1.bf16.msra.mxu0 %v179
    %281 = vmatprep.subr.bf16.mxu0 %v182
    %282 = vmatpush1.bf16.msra.mxu0 %v181
    %283 = vmatprep.subr.bf16.mxu0 %v184
    %284 = vmatpush1.bf16.msra.mxu0 %v183
    %285 = vmatprep.subr.bf16.mxu0 %v186
    %286 = vmatpush1.bf16.msra.mxu0 %v185
    %287 = vmatprep.subr.bf16.mxu0 0
    %288 = vmatpush1.bf16.msra.mxu0 0
    %289 = vmatprep.subr.bf16.mxu0 0
    %290 = vmatpush1.bf16.msra.mxu0 0
    %291 = vmatprep.subr.bf16.mxu0 0
    %292 = vmatpush1.bf16.msra.mxu0 0
    %293 = vmatprep.subr.bf16.mxu0 0
    %294 = vmatpush1.bf16.msra.mxu0 0
    %295 = vmatprep.subr.bf16.mxu0 0
    %296 = vmatpush1.bf16.msra.mxu0 0
    %297 = vmatprep.subr.bf16.mxu0 0
    %298 = vmatpush1.bf16.msra.mxu0 0
    %299 = vmatprep.subr.bf16.mxu0 0
    %300 = vmatpush1.bf16.msra.mxu0 0
    %301 = vmatprep.subr.bf16.mxu0 0
    %302 = vmatpush1.bf16.msra.mxu0 0
    %303 = vmatprep.subr.bf16.mxu0 0
    %304 = vmatpush1.bf16.msra.mxu0 0
    %305 = vmatprep.subr.bf16.mxu0 0
    %306 = vmatpush1.bf16.msra.mxu0 0
    %307 = vmatprep.subr.bf16.mxu0 0
    %308 = vmatpush1.bf16.msra.mxu0 0
    %309 = vmatprep.subr.bf16.mxu0 0
    %310 = vmatpush1.bf16.msra.mxu0 0
    %311 = vmatprep.mubr.bf16.mxu0 0
    %312 = vmatmul.mubr.bf16.gmra.mrb[0].mxu0 %v277
    %v313 = vpop.f32.mrb[0].mxu0
    %v314 = vadd.f32 %v199, %v313
    %v315 = vpop.f32.mrb[0].mxu0
    %v316 = vadd.f32 %v203, %v315
    %v317 = vpop.f32.mrb[0].mxu0
    %v318 = vpop.f32.mrb[0].mxu0
    %319 = vdwg.mxu0
    %v321 = vrot.slane %v314, 7
    %v323 = vadd.f32 %v149, %v321
    %v324 = vmul.f32 %v323, 0.5
    %v325 = vtanh.pop %v324
    %v326 = vadd.f32 %v325, 1.0
    %v327 = vmul.f32 %v326, 0.5
    %v329 = vrot.slane %v316, 7
    %330 = vrot.lane.b32.xlu0 %v329, 64
    %v331 = vpop.permute.xlu0 %330
    %v333 = vmul.f32 %v327, %v331
    %335 = vrot.lane.b32.xlu0 %v333, 64
    %v336 = vpop.permute.xlu0 %335
    %v338 = vadd.f32 %v151, %v336
    %v339 = vtanh.pop %v338
    %v340 = vsub.f32 1.0, %v327
    %v341 = vmul.f32 %v340, %v339
    %v343 = vrot.slane %v270, 7
    %v345 = vmul.f32 %v327, %v343
    %v346 = vadd.f32 %v341, %v345
    %vm347 = vcmask 254977
    %348 = vst.msk [vmem:[#allocation2] sm:$0x2] %vm347, %v346
    %vm349 = vcmask 517377
    %350 = vst.msk [vmem:[#allocation2 + $0x5] sm:$0x2] %vm349, %v346
    %v351 = vpack.c.bf16 %v346, %v346
    %v353 = vshrl.u32 %v351, 16
    %v356 = vsel %vm206, %v353, 0
    %358 = vmatprep.subr.bf16.mxu0 %v180
    %359 = vmatpush1.bf16.msra.mxu0 %v179
    %360 = vmatprep.subr.bf16.mxu0 %v182
    %361 = vmatpush1.bf16.msra.mxu0 %v181
    %362 = vmatprep.subr.bf16.mxu0 %v184
    %363 = vmatpush1.bf16.msra.mxu0 %v183
    %364 = vmatprep.subr.bf16.mxu0 %v186
    %365 = vmatpush1.bf16.msra.mxu0 %v185
    %366 = vmatprep.subr.bf16.mxu0 0
    %367 = vmatpush1.bf16.msra.mxu0 0
    %368 = vmatprep.subr.bf16.mxu0 0
    %369 = vmatpush1.bf16.msra.mxu0 0
    %370 = vmatprep.subr.bf16.mxu0 0
    %371 = vmatpush1.bf16.msra.mxu0 0
    %372 = vmatprep.subr.bf16.mxu0 0
    %373 = vmatpush1.bf16.msra.mxu0 0
    %374 = vmatprep.subr.bf16.mxu0 0
    %375 = vmatpush1.bf16.msra.mxu0 0
    %376 = vmatprep.subr.bf16.mxu0 0
    %377 = vmatpush1.bf16.msra.mxu0 0
    %378 = vmatprep.subr.bf16.mxu0 0
    %379 = vmatpush1.bf16.msra.mxu0 0
    %380 = vmatprep.subr.bf16.mxu0 0
    %381 = vmatpush1.bf16.msra.mxu0 0
    %382 = vmatprep.subr.bf16.mxu0 0
    %383 = vmatpush1.bf16.msra.mxu0 0
    %384 = vmatprep.subr.bf16.mxu0 0
    %385 = vmatpush1.bf16.msra.mxu0 0
    %386 = vmatprep.subr.bf16.mxu0 0
    %387 = vmatpush1.bf16.msra.mxu0 0
    %388 = vmatprep.subr.bf16.mxu0 0
    %389 = vmatpush1.bf16.msra.mxu0 0
    %390 = vmatprep.mubr.bf16.mxu0 0
    %391 = vmatmul.mubr.bf16.gmra.mrb[0].mxu0 %v356
    %v392 = vpop.f32.mrb[0].mxu0
    %v393 = vadd.f32 %v199, %v392
    %v394 = vpop.f32.mrb[0].mxu0
    %v395 = vadd.f32 %v203, %v394
    %v396 = vpop.f32.mrb[0].mxu0
    %v397 = vpop.f32.mrb[0].mxu0
    %398 = vdwg.mxu0
    %v400 = vrot.slane %v393, 6
    %v402 = vadd.f32 %v149, %v400
    %v403 = vmul.f32 %v402, 0.5
    %v404 = vtanh.pop %v403
    %v405 = vadd.f32 %v404, 1.0
    %v406 = vmul.f32 %v405, 0.5
    %v408 = vrot.slane %v395, 6
    %409 = vrot.lane.b32.xlu0 %v408, 64
    %v410 = vpop.permute.xlu0 %409
    %v412 = vmul.f32 %v406, %v410
    %414 = vrot.lane.b32.xlu0 %v412, 64
    %v415 = vpop.permute.xlu0 %414
    %v417 = vadd.f32 %v151, %v415
    %v418 = vtanh.pop %v417
    %v419 = vsub.f32 1.0, %v406
    %v420 = vmul.f32 %v419, %v418
    %v422 = vrot.slane %v346, 7
    %v424 = vmul.f32 %v406, %v422
    %v425 = vadd.f32 %v420, %v424
    %vm426 = vcmask 256002
    %427 = vst.msk [vmem:[#allocation2] sm:$0x4] %vm426, %v425
    %vm428 = vcmask 518402
    %429 = vst.msk [vmem:[#allocation2 + $0x3] sm:$0x4] %vm428, %v425
    %v430 = vpack.c.bf16 %v425, %v425
    %v432 = vrot.slane %v430, 1
    %v434 = vsel %vm206, %v432, 0
    %436 = vmatprep.subr.bf16.mxu0 %v180
    %437 = vmatpush1.bf16.msra.mxu0 %v179
    %438 = vmatprep.subr.bf16.mxu0 %v182
    %439 = vmatpush1.bf16.msra.mxu0 %v181
    %440 = vmatprep.subr.bf16.mxu0 %v184
    %441 = vmatpush1.bf16.msra.mxu0 %v183
    %442 = vmatprep.subr.bf16.mxu0 %v186
    %443 = vmatpush1.bf16.msra.mxu0 %v185
    %444 = vmatprep.subr.bf16.mxu0 0
    %445 = vmatpush1.bf16.msra.mxu0 0
    %446 = vmatprep.subr.bf16.mxu0 0
    %447 = vmatpush1.bf16.msra.mxu0 0
    %448 = vmatprep.subr.bf16.mxu0 0
    %449 = vmatpush1.bf16.msra.mxu0 0
    %450 = vmatprep.subr.bf16.mxu0 0
    %451 = vmatpush1.bf16.msra.mxu0 0
    %452 = vmatprep.subr.bf16.mxu0 0
    %453 = vmatpush1.bf16.msra.mxu0 0
    %454 = vmatprep.subr.bf16.mxu0 0
    %455 = vmatpush1.bf16.msra.mxu0 0
    %456 = vmatprep.subr.bf16.mxu0 0
    %457 = vmatpush1.bf16.msra.mxu0 0
    %458 = vmatprep.subr.bf16.mxu0 0
    %459 = vmatpush1.bf16.msra.mxu0 0
    %460 = vmatprep.subr.bf16.mxu0 0
    %461 = vmatpush1.bf16.msra.mxu0 0
    %462 = vmatprep.subr.bf16.mxu0 0
    %463 = vmatpush1.bf16.msra.mxu0 0
    %464 = vmatprep.subr.bf16.mxu0 0
    %465 = vmatpush1.bf16.msra.mxu0 0
    %466 = vmatprep.subr.bf16.mxu0 0
    %467 = vmatpush1.bf16.msra.mxu0 0
    %468 = vmatprep.mubr.bf16.mxu0 0
    %469 = vmatmul.mubr.bf16.gmra.mrb[0].mxu0 %v434
    %v470 = vpop.f32.mrb[0].mxu0
    %v471 = vadd.f32 %v199, %v470
    %v472 = vpop.f32.mrb[0].mxu0
    %v473 = vadd.f32 %v203, %v472
    %v474 = vpop.f32.mrb[0].mxu0
    %v475 = vpop.f32.mrb[0].mxu0
    %476 = vdwg.mxu0
    %v478 = vrot.slane %v471, 5
    %v480 = vadd.f32 %v149, %v478
    %v481 = vmul.f32 %v480, 0.5
    %v482 = vtanh.pop %v481
    %v483 = vadd.f32 %v482, 1.0
    %v484 = vmul.f32 %v483, 0.5
    %v486 = vrot.slane %v473, 5
    %487 = vrot.lane.b32.xlu0 %v486, 64
    %v488 = vpop.permute.xlu0 %487
    %v490 = vmul.f32 %v484, %v488
    %492 = vrot.lane.b32.xlu0 %v490, 64
    %v493 = vpop.permute.xlu0 %492
    %v495 = vadd.f32 %v151, %v493
    %v496 = vtanh.pop %v495
    %v497 = vsub.f32 1.0, %v484
    %v498 = vmul.f32 %v497, %v496
    %v500 = vrot.slane %v425, 7
    %v502 = vmul.f32 %v484, %v500
    %v503 = vadd.f32 %v498, %v502
    %vm504 = vcmask 257027
    %505 = vst.msk [vmem:[#allocation2] sm:$0x8] %vm504, %v503
    %vm506 = vcmask 519427
    %507 = vst.msk [vmem:[#allocation2 + $0x1] sm:$0x8] %vm506, %v503
    %v508 = vpack.c.bf16 %v503, %v503
    %v510 = vshrl.u32 %v508, 16
    %v512 = vrot.slane %v510, 1
    %v514 = vsel %vm206, %v512, 0
    %516 = vmatprep.subr.bf16.mxu0 %v180
    %517 = vmatpush1.bf16.msra.mxu0 %v179
    %518 = vmatprep.subr.bf16.mxu0 %v182
    %519 = vmatpush1.bf16.msra.mxu0 %v181
    %520 = vmatprep.subr.bf16.mxu0 %v184
    %521 = vmatpush1.bf16.msra.mxu0 %v183
    %522 = vmatprep.subr.bf16.mxu0 %v186
    %523 = vmatpush1.bf16.msra.mxu0 %v185
    %524 = vmatprep.subr.bf16.mxu0 0
    %525 = vmatpush1.bf16.msra.mxu0 0
    %526 = vmatprep.subr.bf16.mxu0 0
    %527 = vmatpush1.bf16.msra.mxu0 0
    %528 = vmatprep.subr.bf16.mxu0 0
    %529 = vmatpush1.bf16.msra.mxu0 0
    %530 = vmatprep.subr.bf16.mxu0 0
    %531 = vmatpush1.bf16.msra.mxu0 0
    %532 = vmatprep.subr.bf16.mxu0 0
    %533 = vmatpush1.bf16.msra.mxu0 0
    %534 = vmatprep.subr.bf16.mxu0 0
    %535 = vmatpush1.bf16.msra.mxu0 0
    %536 = vmatprep.subr.bf16.mxu0 0
    %537 = vmatpush1.bf16.msra.mxu0 0
    %538 = vmatprep.subr.bf16.mxu0 0
    %539 = vmatpush1.bf16.msra.mxu0 0
    %540 = vmatprep.subr.bf16.mxu0 0
    %541 = vmatpush1.bf16.msra.mxu0 0
    %542 = vmatprep.subr.bf16.mxu0 0
    %543 = vmatpush1.bf16.msra.mxu0 0
    %544 = vmatprep.subr.bf16.mxu0 0
    %545 = vmatpush1.bf16.msra.mxu0 0
    %546 = vmatprep.subr.bf16.mxu0 0
    %547 = vmatpush1.bf16.msra.mxu0 0
    %548 = vmatprep.mubr.bf16.mxu0 0
    %549 = vmatmul.mubr.bf16.gmra.mrb[0].mxu0 %v514
    %v550 = vpop.f32.mrb[0].mxu0
    %v551 = vadd.f32 %v199, %v550
    %v552 = vpop.f32.mrb[0].mxu0
    %v553 = vadd.f32 %v203, %v552
    %v554 = vpop.f32.mrb[0].mxu0
    %v555 = vpop.f32.mrb[0].mxu0
    %556 = vdwg.mxu0
    %v558 = vrot.slane %v551, 4
    %v560 = vadd.f32 %v149, %v558
    %v561 = vmul.f32 %v560, 0.5
    %v562 = vtanh.pop %v561
    %v563 = vadd.f32 %v562, 1.0
    %v564 = vmul.f32 %v563, 0.5
    %v566 = vrot.slane %v553, 4
    %567 = vrot.lane.b32.xlu0 %v566, 64
    %v568 = vpop.permute.xlu0 %567
    %v570 = vmul.f32 %v564, %v568
    %572 = vrot.lane.b32.xlu0 %v570, 64
    %v573 = vpop.permute.xlu0 %572
    %v575 = vadd.f32 %v151, %v573
    %v576 = vtanh.pop %v575
    %v577 = vsub.f32 1.0, %v564
    %v578 = vmul.f32 %v577, %v576
    %v580 = vrot.slane %v503, 7
    %v582 = vmul.f32 %v564, %v580
    %v583 = vadd.f32 %v578, %v582
    %vm584 = vcmask 258052
    %585 = vst.msk [vmem:[#allocation2] sm:$0x10] %vm584, %v583
    %vm586 = vcmask 520452
    %587 = vst.msk [vmem:[#allocation2 - $0x1] sm:$0x10] %vm586, %v583
    %v588 = vpack.c.bf16 %v583, %v583
    %v590 = vrot.slane %v588, 2
    %v592 = vsel %vm206, %v590, 0
    %594 = vmatprep.subr.bf16.mxu0 %v180
    %595 = vmatpush1.bf16.msra.mxu0 %v179
    %596 = vmatprep.subr.bf16.mxu0 %v182
    %597 = vmatpush1.bf16.msra.mxu0 %v181
    %598 = vmatprep.subr.bf16.mxu0 %v184
    %599 = vmatpush1.bf16.msra.mxu0 %v183
    %600 = vmatprep.subr.bf16.mxu0 %v186
    %601 = vmatpush1.bf16.msra.mxu0 %v185
    %602 = vmatprep.subr.bf16.mxu0 0
    %603 = vmatpush1.bf16.msra.mxu0 0
    %604 = vmatprep.subr.bf16.mxu0 0
    %605 = vmatpush1.bf16.msra.mxu0 0
    %606 = vmatprep.subr.bf16.mxu0 0
    %607 = vmatpush1.bf16.msra.mxu0 0
    %608 = vmatprep.subr.bf16.mxu0 0
    %609 = vmatpush1.bf16.msra.mxu0 0
    %610 = vmatprep.subr.bf16.mxu0 0
    %611 = vmatpush1.bf16.msra.mxu0 0
    %612 = vmatprep.subr.bf16.mxu0 0
    %613 = vmatpush1.bf16.msra.mxu0 0
    %614 = vmatprep.subr.bf16.mxu0 0
    %615 = vmatpush1.bf16.msra.mxu0 0
    %616 = vmatprep.subr.bf16.mxu0 0
    %617 = vmatpush1.bf16.msra.mxu0 0
    %618 = vmatprep.subr.bf16.mxu0 0
    %619 = vmatpush1.bf16.msra.mxu0 0
    %620 = vmatprep.subr.bf16.mxu0 0
    %621 = vmatpush1.bf16.msra.mxu0 0
    %622 = vmatprep.subr.bf16.mxu0 0
    %623 = vmatpush1.bf16.msra.mxu0 0
    %624 = vmatprep.subr.bf16.mxu0 0
    %625 = vmatpush1.bf16.msra.mxu0 0
    %626 = vmatprep.mubr.bf16.mxu0 0
    %627 = vmatmul.mubr.bf16.gmra.mrb[0].mxu0 %v592
    %v628 = vpop.f32.mrb[0].mxu0
    %v629 = vadd.f32 %v199, %v628
    %v630 = vpop.f32.mrb[0].mxu0
    %v631 = vadd.f32 %v203, %v630
    %v632 = vpop.f32.mrb[0].mxu0
    %v633 = vpop.f32.mrb[0].mxu0
    %634 = vdwg.mxu0
    %v636 = vrot.slane %v629, 3
    %v638 = vadd.f32 %v149, %v636
    %v639 = vmul.f32 %v638, 0.5
    %v640 = vtanh.pop %v639
    %v641 = vadd.f32 %v640, 1.0
    %v642 = vmul.f32 %v641, 0.5
    %v644 = vrot.slane %v631, 3
    %645 = vrot.lane.b32.xlu0 %v644, 64
    %v646 = vpop.permute.xlu0 %645
    %v648 = vmul.f32 %v642, %v646
    %650 = vrot.lane.b32.xlu0 %v648, 64
    %v651 = vpop.permute.xlu0 %650
    %v653 = vadd.f32 %v151, %v651
    %v654 = vtanh.pop %v653
    %v655 = vsub.f32 1.0, %v642
    %v656 = vmul.f32 %v655, %v654
    %v658 = vrot.slane %v583, 7
    %v660 = vmul.f32 %v642, %v658
    %v661 = vadd.f32 %v656, %v660
    %vm662 = vcmask 259077
    %663 = vst.msk [vmem:[#allocation2] sm:$0x20] %vm662, %v661
    %vm664 = vcmask 521477
    %665 = vst.msk [vmem:[#allocation2 - $0x3] sm:$0x20] %vm664, %v661
    %v666 = vpack.c.bf16 %v661, %v661
    %v668 = vshrl.u32 %v666, 16
    %v670 = vrot.slane %v668, 2
    %v672 = vsel %vm206, %v670, 0
    %674 = vmatprep.subr.bf16.mxu0 %v180
    %675 = vmatpush1.bf16.msra.mxu0 %v179
    %676 = vmatprep.subr.bf16.mxu0 %v182
    %677 = vmatpush1.bf16.msra.mxu0 %v181
    %678 = vmatprep.subr.bf16.mxu0 %v184
    %679 = vmatpush1.bf16.msra.mxu0 %v183
    %680 = vmatprep.subr.bf16.mxu0 %v186
    %681 = vmatpush1.bf16.msra.mxu0 %v185
    %682 = vmatprep.subr.bf16.mxu0 0
    %683 = vmatpush1.bf16.msra.mxu0 0
    %684 = vmatprep.subr.bf16.mxu0 0
    %685 = vmatpush1.bf16.msra.mxu0 0
    %686 = vmatprep.subr.bf16.mxu0 0
    %687 = vmatpush1.bf16.msra.mxu0 0
    %688 = vmatprep.subr.bf16.mxu0 0
    %689 = vmatpush1.bf16.msra.mxu0 0
    %690 = vmatprep.subr.bf16.mxu0 0
    %691 = vmatpush1.bf16.msra.mxu0 0
    %692 = vmatprep.subr.bf16.mxu0 0
    %693 = vmatpush1.bf16.msra.mxu0 0
    %694 = vmatprep.subr.bf16.mxu0 0
    %695 = vmatpush1.bf16.msra.mxu0 0
    %696 = vmatprep.subr.bf16.mxu0 0
    %697 = vmatpush1.bf16.msra.mxu0 0
    %698 = vmatprep.subr.bf16.mxu0 0
    %699 = vmatpush1.bf16.msra.mxu0 0
    %700 = vmatprep.subr.bf16.mxu0 0
    %701 = vmatpush1.bf16.msra.mxu0 0
    %702 = vmatprep.subr.bf16.mxu0 0
    %703 = vmatpush1.bf16.msra.mxu0 0
    %704 = vmatprep.subr.bf16.mxu0 0
    %705 = vmatpush1.bf16.msra.mxu0 0
    %706 = vmatprep.mubr.bf16.mxu0 0
    %707 = vmatmul.mubr.bf16.gmra.mrb[0].mxu0 %v672
    %v708 = vpop.f32.mrb[0].mxu0
    %v709 = vadd.f32 %v199, %v708
    %v710 = vpop.f32.mrb[0].mxu0
    %v711 = vadd.f32 %v203, %v710
    %v712 = vpop.f32.mrb[0].mxu0
    %v713 = vpop.f32.mrb[0].mxu0
    %714 = vdwg.mxu0
    %v716 = vrot.slane %v709, 2
    %v718 = vadd.f32 %v149, %v716
    %v719 = vmul.f32 %v718, 0.5
    %v720 = vtanh.pop %v719
    %v721 = vadd.f32 %v720, 1.0
    %v722 = vmul.f32 %v721, 0.5
    %v724 = vrot.slane %v711, 2
    %725 = vrot.lane.b32.xlu0 %v724, 64
    %v726 = vpop.permute.xlu0 %725
    %v728 = vmul.f32 %v722, %v726
    %730 = vrot.lane.b32.xlu0 %v728, 64
    %v731 = vpop.permute.xlu0 %730
    %v733 = vadd.f32 %v151, %v731
    %v734 = vtanh.pop %v733
    %v735 = vsub.f32 1.0, %v722
    %v736 = vmul.f32 %v735, %v734
    %v738 = vrot.slane %v661, 7
    %v740 = vmul.f32 %v722, %v738
    %v741 = vadd.f32 %v736, %v740
    %vm742 = vcmask 260102
    %743 = vst.msk [vmem:[#allocation2] sm:$0x40] %vm742, %v741
    %vm744 = vcmask 522502
    %745 = vst.msk [vmem:[#allocation2 - $0x5] sm:$0x40] %vm744, %v741
    %v746 = vpack.c.bf16 %v741, %v741
    %v748 = vrot.slane %v746, 3
    %v750 = vsel %vm206, %v748, 0
    %752 = vmatprep.subr.bf16.mxu0 %v180
    %753 = vmatpush1.bf16.msra.mxu0 %v179
    %754 = vmatprep.subr.bf16.mxu0 %v182
    %755 = vmatpush1.bf16.msra.mxu0 %v181
    %756 = vmatprep.subr.bf16.mxu0 %v184
    %757 = vmatpush1.bf16.msra.mxu0 %v183
    %758 = vmatprep.subr.bf16.mxu0 %v186
    %759 = vmatpush1.bf16.msra.mxu0 %v185
    %760 = vmatprep.subr.bf16.mxu0 0
    %761 = vmatpush1.bf16.msra.mxu0 0
    %762 = vmatprep.subr.bf16.mxu0 0
    %763 = vmatpush1.bf16.msra.mxu0 0
    %764 = vmatprep.subr.bf16.mxu0 0
    %765 = vmatpush1.bf16.msra.mxu0 0
    %766 = vmatprep.subr.bf16.mxu0 0
    %767 = vmatpush1.bf16.msra.mxu0 0
    %768 = vmatprep.subr.bf16.mxu0 0
    %769 = vmatpush1.bf16.msra.mxu0 0
    %770 = vmatprep.subr.bf16.mxu0 0
    %771 = vmatpush1.bf16.msra.mxu0 0
    %772 = vmatprep.subr.bf16.mxu0 0
    %773 = vmatpush1.bf16.msra.mxu0 0
    %774 = vmatprep.subr.bf16.mxu0 0
    %775 = vmatpush1.bf16.msra.mxu0 0
    %776 = vmatprep.subr.bf16.mxu0 0
    %777 = vmatpush1.bf16.msra.mxu0 0
    %778 = vmatprep.subr.bf16.mxu0 0
    %779 = vmatpush1.bf16.msra.mxu0 0
    %780 = vmatprep.subr.bf16.mxu0 0
    %781 = vmatpush1.bf16.msra.mxu0 0
    %782 = vmatprep.subr.bf16.mxu0 0
    %783 = vmatpush1.bf16.msra.mxu0 0
    %784 = vmatprep.mubr.bf16.mxu0 0
    %785 = vmatmul.mubr.bf16.gmra.mrb[0].mxu0 %v750
    %v786 = vpop.f32.mrb[0].mxu0
    %v787 = vadd.f32 %v199, %v786
    %v788 = vpop.f32.mrb[0].mxu0
    %v789 = vadd.f32 %v203, %v788
    %v790 = vpop.f32.mrb[0].mxu0
    %v791 = vpop.f32.mrb[0].mxu0
    %792 = vdwg.mxu0
    %v794 = vrot.slane %v787, 1
    %v796 = vadd.f32 %v149, %v794
    %v797 = vmul.f32 %v796, 0.5
    %v798 = vtanh.pop %v797
    %v799 = vadd.f32 %v798, 1.0
    %v800 = vmul.f32 %v799, 0.5
    %v802 = vrot.slane %v789, 1
    %803 = vrot.lane.b32.xlu0 %v802, 64
    %v804 = vpop.permute.xlu0 %803
    %v806 = vmul.f32 %v800, %v804
    %808 = vrot.lane.b32.xlu0 %v806, 64
    %v809 = vpop.permute.xlu0 %808
    %v811 = vadd.f32 %v151, %v809
    %v812 = vtanh.pop %v811
    %v813 = vsub.f32 1.0, %v800
    %v814 = vmul.f32 %v813, %v812
    %v816 = vrot.slane %v741, 7
    %v818 = vmul.f32 %v800, %v816
    %v819 = vadd.f32 %v814, %v818
    %vm820 = vcmask 261127
    %821 = vst.msk [vmem:[#allocation2] sm:$0x80] %vm820, %v819
    %vm822 = vcmask 523527
    %823 = vst.msk [vmem:[#allocation2 - $0x7] sm:$0x80] %vm822, %v819
    %v824 = vld [vmem:[#allocation2] sm:$0xff]
    %v825 = vpack.c.bf16 %v824, %v824
    %v826 = vlaneseq
    %v827 = vshrl.u32 %v826, 7
    %v828 = vsub.s32 0, %v827
    %v829 = vrot.slane %v76, %v828
    %v838 = vunpack.c.l.b16 %v65
    %v839 = vunpack.c.l.b16 %v66
    %v840 = vunpack.c.l.b16 %v67
    %v841 = vunpack.c.l.b16 %v68
    %v842 = vunpack.c.l.b16 %v69
    %v843 = vunpack.c.l.b16 %v70
    %v844 = vunpack.c.l.b16 %v71
    %v845 = vunpack.c.l.b16 %v72
    %v846 = vpack.c.b16 %v839, %v838
    %v847 = vpack.c.b16 %v841, %v840
    %v848 = vpack.c.b16 %v843, %v842
    %v849 = vpack.c.b16 %v845, %v844
    %v855 = vsel %vm206, %v825, 0
    %857 = vmatprep.subr.bf16.mxu0 0
    %858 = vmatpush1.bf16.msra.mxu0 %v846
    %859 = vmatprep.subr.bf16.mxu0 0
    %860 = vmatpush1.bf16.msra.mxu0 %v847
    %861 = vmatprep.subr.bf16.mxu0 0
    %862 = vmatpush1.bf16.msra.mxu0 %v848
    %863 = vmatprep.subr.bf16.mxu0 0
    %864 = vmatpush1.bf16.msra.mxu0 %v849
    %865 = vmatprep.subr.bf16.mxu0 0
    %866 = vmatpush1.bf16.msra.mxu0 0
    %867 = vmatprep.subr.bf16.mxu0 0
    %868 = vmatpush1.bf16.msra.mxu0 0
    %869 = vmatprep.subr.bf16.mxu0 0
    %870 = vmatpush1.bf16.msra.mxu0 0
    %871 = vmatprep.subr.bf16.mxu0 0
    %872 = vmatpush1.bf16.msra.mxu0 0
    %873 = vmatprep.subr.bf16.mxu0 0
    %874 = vmatpush1.bf16.msra.mxu0 0
    %875 = vmatprep.subr.bf16.mxu0 0
    %876 = vmatpush1.bf16.msra.mxu0 0
    %877 = vmatprep.subr.bf16.mxu0 0
    %878 = vmatpush1.bf16.msra.mxu0 0
    %879 = vmatprep.subr.bf16.mxu0 0
    %880 = vmatpush1.bf16.msra.mxu0 0
    %881 = vmatprep.subr.bf16.mxu0 0
    %882 = vmatpush1.bf16.msra.mxu0 0
    %883 = vmatprep.subr.bf16.mxu0 0
    %884 = vmatpush1.bf16.msra.mxu0 0
    %885 = vmatprep.subr.bf16.mxu0 0
    %886 = vmatpush1.bf16.msra.mxu0 0
    %887 = vmatprep.subr.bf16.mxu0 0
    %888 = vmatpush1.bf16.msra.mxu0 0
    %889 = vmatprep.mubr.bf16.mxu0 0
    %890 = vmatmul.mubr.bf16.gmra.mrb[0].mxu0 %v855
    %v891 = vpop.f32.mrb[0].mxu0
    %v892 = vadd.f32 %v829, %v891
    %v893 = vpop.f32.mrb[0].mxu0
    %v894 = vpop.f32.mrb[0].mxu0
    %v895 = vpop.f32.mrb[0].mxu0
    %896 = vdwg.mxu0
    %vm897 = vcmask 15360
    %v898 = vsel %vm897, %v892, -inf
    %899 = vmax.xlane.f32.xlu0 %v898
    %v900 = vpop.xlane.xlu0 %899
    %v901 = vsub.f32 %v892, %v900
    %v902 = vmul.f32 %v901, 1.442695
    %v903 = vpow.pop %v902
    %v904 = vsel %vm897, %v903, 0.0
    %905 = vadd.xlane.f32.xlu0 %v904
    %v906 = vpop.xlane.xlu0 %905
    %v907 = vlog2.pop %v906
    %v908 = vmul.f32 %v907, 0.6931472
    %v909 = vadd.f32 %v900, %v908
    %v910 = vsub.f32 %v892, %v909
    %911 = vst [vmem:[#allocation9] sm:$0xff] %v910
    // Predicated region
    $region26: #{tpu_custom_call.1} parent=1 // pred_check
      _
    $region27: #{tpu_custom_call.1} parent=1 // pred_check_branch
      %913 = sbr.rel (0) target = $region29
    $region28: #{tpu_custom_call.1} parent=1 // pred_region
      %s915 = ssub.s32 128, 128
      %916 = vsyncadd [#allocation5], %s915
      %s918 = sshll.u32 [#allocation9], 4
      %s919 = int_to_ptr.vmem [resolvable:$true] %s918
      %921 = dma.vmem_to_hbm [thread:$0]  %s919, 128, %s3, [#allocation5]
    $region29: #{tpu_custom_call.1} parent=1 // pred_fallthru
      _
    // Predicated region
    $region30: #{tpu_custom_call.1} parent=1 // pred_check
      _
    $region31: #{tpu_custom_call.1} parent=1 // pred_check_branch
      %923 = sbr.rel (0) target = $region33
    $region32: #{tpu_custom_call.1} parent=1 // pred_region
      %924 = dma.done [#allocation5], 128
    $region33: #{tpu_custom_call.1} parent=1 // pred_fallthru
      _
    %925 = vsyncpa [#allocation4], 1
    %926 = vsyncpa [#allocation7], 1
    %927 = vsyncpa [#allocation5], 1

</llo_original>
